<compile_context>
chip_gen: v6e
topology: v6e:2x2x1
jax: 0.10.0
libtpu: 0.0.40
codegen_flags: <defaults>
</compile_context>

<pallas_src>
import math

import jax
import jax.numpy as jnp
from jax.experimental import pallas as pl
from jax.experimental.pallas import tpu as pltpu


def _round_up(v, m):
    return ((v + m - 1) // m) * m


def _padded_bytes(shape, itemsize):
    """Approx. VMEM footprint: last dim -> 128 lanes, 2nd-last -> 8 sublanes."""
    dims = list(shape)
    if len(dims) >= 1:
        dims[-1] = _round_up(dims[-1], 128)
    if len(dims) >= 2:
        dims[-2] = _round_up(dims[-2], 8)
    n = 1
    for d in dims:
        n *= d
    return n * itemsize


def _vmem_capacity_bytes():
    try:
        return int(pltpu.get_tpu_info().vmem_capacity_bytes)
    except Exception:
        return 64 * 2**20  # conservative: assume v7x-class (64 MiB / TensorCore)


def _estimate_vmem(rt, tj, B, D, Dc, in_item, out_item, has_transform):
    """Rough total VMEM working set for one kernel configuration."""
    n_j = B // tj
    total = 2 * _padded_bytes((rt, tj, D), in_item)        # M tile (double-buffered)
    total += 2 * _padded_bytes((rt, Dc), in_item)           # x tile
    if has_transform:
        total += 2 * _padded_bytes((Dc, D), in_item)        # W^T
    total += 2 * _padded_bytes((rt, D), out_item)           # attn_pool out block
    total += 2 * _padded_bytes((rt, B), out_item)           # alpha out block
    total += _padded_bytes((rt, D), 4)                      # transform(x) scratch
    total += 2 * _padded_bytes((rt, 1), 4)                  # running max / denom
    total += _padded_bytes((rt, D), 4)                      # pool accumulator
    total += n_j * _padded_bytes((rt, tj), 4)               # raw-score stash
    return total


def _choose_tiles(S, B, D, Dc, in_item, out_item, has_transform,
                  m_buf_budget, work_budget):
    """Pick (row_tile, seq_tile). Prefer full-seq blocks; tile seq if needed."""
    # Output blocks are (row_tile, D)/(row_tile, B): row_tile is their sublane
    # dim, so it must be a multiple of the packed sublane count (or == S).
    sub = max(8, 32 // max(out_item, 1))      # f32 -> 8, bf16 -> 16, int8 -> 32
    row_cands = [d for d in range(S, 0, -1)
                 if S % d == 0 and (d % sub == 0 or d == S)]
    if S >= 16:                               # keep >=2 tiles for v7x's 2 TCs
        pref = [d for d in row_cands if d <= S // 2]
        row_cands = pref or row_cands
    seq_cands = [d for d in range(B, 0, -1)
                 if B % d == 0 and (d % 8 == 0 or d == B)]

    def fits(rt, tj):
        return (rt * tj * D * in_item <= m_buf_budget and
                _estimate_vmem(rt, tj, B, D, Dc, in_item, out_item,
                               has_transform) <= work_budget)

    for rt in row_cands:                      # full seq slab per block if possible
        if fits(rt, B):
            return rt, B
    rt = row_cands[-1]                        # smallest legal row tile
    for tj in seq_cands:                      # tile the seq axis (online softmax)
        if fits(rt, tj):
            return rt, tj
    return rt, seq_cands[-1]                  # correctness over budget (rare shapes)


def _make_kernel(has_transform: bool, n_j: int, seq_tile: int):
    def kernel(*refs):
        if has_transform:
            (m_ref, x_ref, wt_ref, pool_ref, alpha_ref,
             xt_sc, m_sc, l_sc, acc_sc, s_sc) = refs
        else:
            (m_ref, x_ref, pool_ref, alpha_ref,
             xt_sc, m_sc, l_sc, acc_sc, s_sc) = refs

        j = pl.program_id(1)

        @pl.when(j == 0)
        def _init():
            if has_transform:
                # x_ = transform(x) = x @ W^T    (small MXU matmul, once per row tile)
                xt_sc[...] = jnp.dot(x_ref[...], wt_ref[...],
                                     preferred_element_type=jnp.float32)
            else:
                xt_sc[...] = x_ref[...].astype(jnp.float32)
            m_sc[...] = jnp.full(m_sc.shape, -jnp.inf, dtype=m_sc.dtype)
            l_sc[...] = jnp.zeros(l_sc.shape, dtype=l_sc.dtype)
            acc_sc[...] = jnp.zeros(acc_sc.shape, dtype=acc_sc.dtype)

        Mv = m_ref[...]                         # (TB, TJ, D), native dtype (no f32 upcast)
        xt = xt_sc[...].astype(Mv.dtype)        # (TB, D)

        # scores[b, jj] = <xt[b, :], M[b, jj, :]>   (batched MXU, f32 accumulate)
        s = jnp.einsum("bqd,bjd->bqj", xt[:, None, :], Mv,
                       preferred_element_type=jnp.float32)[:, 0, :]    # (TB, TJ) f32

        # Online (flash-style) softmax update across seq tiles.
        m_prev = m_sc[...]                                             # (TB, 1)
        m_new = jnp.maximum(m_prev, jnp.max(s, axis=-1, keepdims=True))
        corr = jnp.exp(m_prev - m_new)
        p = jnp.exp(s - m_new)                                         # (TB, TJ)
        l_sc[...] = corr * l_sc[...] + jnp.sum(p, axis=-1, keepdims=True)
        pv = jnp.einsum("bqj,bjd->bqd", p[:, None, :].astype(Mv.dtype), Mv,
                        preferred_element_type=jnp.float32)[:, 0, :]   # (TB, D)
        acc_sc[...] = corr * acc_sc[...] + pv
        m_sc[...] = m_new

        if n_j > 1:
            # Stash raw scores (leading-axis dynamic index only) so alpha can be
            # emitted exactly at finalize without re-reading M.
            s_sc[j] = s

        @pl.when(j == n_j - 1)
        def _finalize():
            l = l_sc[...]
            r = pl.reciprocal(l, approx=True)     # EUP slot (cheap)
            r = r * (2.0 - l * r)                 # one Newton step -> ~f32-exact
            pool_ref[...] = (acc_sc[...] * r).astype(pool_ref.dtype)
            if n_j == 1:
                alpha_ref[...] = (p * r).astype(alpha_ref.dtype)
            else:
                m_fin = m_sc[...]
                for jj in range(n_j):             # static unroll, static col slices
                    a_jj = jnp.exp(s_sc[jj] - m_fin) * r
                    alpha_ref[:, jj * seq_tile:(jj + 1) * seq_tile] = (
                        a_jj.astype(alpha_ref.dtype))

    return kernel


def matching_attention(M, x, weight=None, att_type="general", *,
                       row_tile=None, seq_tile=None):
    """Pallas forward of MatchingAttention for att_type in {'general', 'dot'}.

    M      : (seq_len, batch, mem_dim), seq_len == batch (literal torch code)
    x      : (batch, cand_dim)          (cand_dim == mem_dim for 'dot')
    weight : (mem_dim, cand_dim)        nn.Linear weight, only for 'general'
    returns: attn_pool (batch, mem_dim), alpha (batch, 1, seq_len)
    """
    S, B, D = M.shape
    assert S == B, "literal torch forward (transpose(1,2) + bmm) needs seq_len == batch"
    Dc = x.shape[-1]

    if att_type == "general":
        assert weight is not None and weight.shape == (D, Dc)
        has_transform = True
    elif att_type == "dot":
        assert Dc == D
        has_transform = False
    else:
        raise NotImplementedError(att_type)  # TODO(synk): 'general2', 'concat'

    in_item = jnp.dtype(M.dtype).itemsize
    out_dtype = M.dtype
    out_item = jnp.dtype(out_dtype).itemsize

    # Generation-aware VMEM budgets (v7x has 64 MiB/TC, v5e/v6e have 128 MiB).
    cap = _vmem_capacity_bytes()
    if cap <= 96 * 2**20:
        vmem_limit = 32 * 2**20
        m_buf_budget = 4 * 2**20
    else:
        vmem_limit = 64 * 2**20
        m_buf_budget = 14 * 2**20
    work_budget = (3 * vmem_limit) // 4

    rt_auto, tj_auto = _choose_tiles(S, B, D, Dc, in_item, out_item,
                                     has_transform, m_buf_budget, work_budget)
    row_tile = rt_auto if row_tile is None else row_tile
    seq_tile = tj_auto if seq_tile is None else seq_tile
    assert S % row_tile == 0 and (row_tile % 8 == 0 or row_tile == S)
    assert B % seq_tile == 0 and (seq_tile % 8 == 0 or seq_tile == B)
    n_i, n_j = S // row_tile, B // seq_tile

    args = [M, x]
    in_specs = [
        pl.BlockSpec((row_tile, seq_tile, D), lambda i, j: (i, j, 0)),
        pl.BlockSpec((row_tile, Dc), lambda i, j: (i, 0)),
    ]
    if has_transform:
        w_t = weight.T                                   # (Dc, D): xt = x @ W^T
        args.append(w_t)
        in_specs.append(pl.BlockSpec((Dc, D), lambda i, j: (0, 0)))

    pool, alpha = pl.pallas_call(
        _make_kernel(has_transform, n_j, seq_tile),
        grid=(n_i, n_j),
        in_specs=in_specs,
        out_specs=(
            pl.BlockSpec((row_tile, D), lambda i, j: (i, 0)),
            pl.BlockSpec((row_tile, B), lambda i, j: (i, 0)),
        ),
        out_shape=(
            jax.ShapeDtypeStruct((S, D), out_dtype),   # attn_pool
            jax.ShapeDtypeStruct((S, B), out_dtype),   # alpha (row b, col j)
        ),
        scratch_shapes=[
            pltpu.VMEM((row_tile, D), jnp.float32),            # transform(x)
            pltpu.VMEM((row_tile, 1), jnp.float32),            # running max m
            pltpu.VMEM((row_tile, 1), jnp.float32),            # running denom l
            pltpu.VMEM((row_tile, D), jnp.float32),            # pool accumulator
            pltpu.VMEM((n_j, row_tile, seq_tile), jnp.float32),  # raw-score stash
        ],
        compiler_params=pltpu.CompilerParams(
            dimension_semantics=("parallel", "arbitrary"),
            vmem_limit_bytes=vmem_limit,
        ),
    )(*args)

    return pool, alpha[:, None, :]


def _torch_style_reference(M, x, weight=None):
    """Pure-JAX transcription of the literal PyTorch forward (high precision)."""
    hp = jax.lax.Precision.HIGHEST
    xt = x if weight is None else jnp.dot(x, weight.T, precision=hp)
    x_ = xt[:, None, :]                          # (B, 1, D)
    M_ = jnp.swapaxes(M, 1, 2)                   # (S, D, B)  == M.transpose(1, 2)
    scores = jnp.matmul(x_, M_, precision=hp)    # (B, 1, B)  == torch.bmm
    alpha = jax.nn.softmax(scores, axis=2)
    pool = jnp.matmul(alpha, M, precision=hp)[:, 0, :]
    return pool, alpha


if __name__ == "__main__":
    key = jax.random.PRNGKey(0)
    k_m, k_x, k_w, k_xd, k_m2, k_x2, k_w2 = jax.random.split(key, 7)

    # --- att_type='general', auto-tiled (S=B=16, mem_dim=32, cand_dim=24) ---
    S = B = 16
    D, Dc = 32, 24
    M = jax.random.normal(k_m, (S, B, D), dtype=jnp.float32)
    x = jax.random.normal(k_x, (B, Dc), dtype=jnp.float32)
    bound = 1.0 / math.sqrt(Dc)   # deterministic nn.Linear-style init, no bias
    W = jax.random.uniform(k_w, (D, Dc), dtype=jnp.float32,
                           minval=-bound, maxval=bound)

    pool, alpha = matching_attention(M, x, W, att_type="general")
    pool, alpha = jax.block_until_ready((pool, alpha))
    pool_r, alpha_r = _torch_style_reference(M, x, W)
    assert pool.shape == (B, D) and alpha.shape == (B, 1, S)
    assert jnp.allclose(pool, pool_r, rtol=1e-3, atol=1e-3)
    assert jnp.allclose(alpha, alpha_r, rtol=1e-3, atol=1e-3)

    # --- att_type='dot' (mem_dim == cand_dim, transform skipped) ---
    x_dot = jax.random.normal(k_xd, (B, D), dtype=jnp.float32)
    pool_d, alpha_d = matching_attention(M, x_dot, att_type="dot")
    pool_d, alpha_d = jax.block_until_ready((pool_d, alpha_d))
    pool_dr, alpha_dr = _torch_style_reference(M, x_dot, None)
    assert pool_d.shape == (B, D) and alpha_d.shape == (B, 1, S)
    assert jnp.allclose(pool_d, pool_dr, rtol=1e-3, atol=1e-3)
    assert jnp.allclose(alpha_d, alpha_dr, rtol=1e-3, atol=1e-3)

    # --- seq-axis tiled online-softmax path (n_j > 1) ---
    S2 = B2 = 32
    D2, Dc2 = 64, 24
    M2 = jax.random.normal(k_m2, (S2, B2, D2), dtype=jnp.float32)
    x2 = jax.random.normal(k_x2, (B2, Dc2), dtype=jnp.float32)
    b2 = 1.0 / math.sqrt(Dc2)
    W2 = jax.random.uniform(k_w2, (D2, Dc2), dtype=jnp.float32,
                            minval=-b2, maxval=b2)
    pool2, alpha2 = matching_attention(M2, x2, W2, att_type="general",
                                       row_tile=8, seq_tile=8)
    pool2, alpha2 = jax.block_until_ready((pool2, alpha2))
    pool2_r, alpha2_r = _torch_style_reference(M2, x2, W2)
    assert pool2.shape == (B2, D2) and alpha2.shape == (B2, 1, S2)
    assert jnp.allclose(pool2, pool2_r, rtol=1e-3, atol=1e-3)
    assert jnp.allclose(alpha2, alpha2_r, rtol=1e-3, atol=1e-3)

    print("KERNEL_OK")
</pallas_src>

<mosaic_0001>
module attributes {stable_mosaic.version = 11 : i64} {
  func.func @kernel(%arg0: i32, %arg1: i32, %arg2: memref<8x16x32xf32, #tpu.memory_space<vmem>>, %arg3: memref<8x24xf32, #tpu.memory_space<vmem>>, %arg4: memref<24x32xf32, #tpu.memory_space<vmem>>, %arg5: memref<8x32xf32, #tpu.memory_space<vmem>>, %arg6: memref<8x16xf32, #tpu.memory_space<vmem>>, %arg7: memref<8x32xf32, #tpu.memory_space<vmem>>, %arg8: memref<8x1xf32, #tpu.memory_space<vmem>>, %arg9: memref<8x1xf32, #tpu.memory_space<vmem>>, %arg10: memref<8x32xf32, #tpu.memory_space<vmem>>, %arg11: memref<1x8x16xf32, #tpu.memory_space<vmem>>) attributes {dimension_semantics = [#tpu.dimension_semantics<parallel>, #tpu.dimension_semantics<arbitrary>], iteration_bounds = array<i64: 2, 1>, scalar_prefetch = 0 : i64, scratch_operands = 5 : i64, tpu.core_type = #tpu.core_type<tc>, window_params = [{transform_indices = @transform_0, window_bounds = array<i64: 8, 16, 32>}, {transform_indices = @transform_1, window_bounds = array<i64: 8, 24>}, {pipeline_mode = #tpu.pipeline_mode<synchronous>, transform_indices = @transform_2, window_bounds = array<i64: 24, 32>}, {transform_indices = @transform_3, window_bounds = array<i64: 8, 32>}, {transform_indices = @transform_4, window_bounds = array<i64: 8, 16>}]} {
    %c0_i32 = arith.constant 0 : i32
    %0 = arith.cmpi eq, %arg1, %c0_i32 : i32
    %1 = arith.extui %0 : i1 to i32
    %c0_i32_0 = arith.constant 0 : i32
    %2 = arith.cmpi ne, %1, %c0_i32_0 : i32
    scf.if %2 {
      %c0_22 = arith.constant 0 : index
      %c0_23 = arith.constant 0 : index
      %35 = vector.load %arg3[%c0_22, %c0_23] : memref<8x24xf32, #tpu.memory_space<vmem>>, vector<8x24xf32>
      %c0_24 = arith.constant 0 : index
      %c0_25 = arith.constant 0 : index
      %36 = vector.load %arg4[%c0_24, %c0_25] : memref<24x32xf32, #tpu.memory_space<vmem>>, vector<24x32xf32>
      %cst_26 = arith.constant dense<0.000000e+00> : vector<8x32xf32>
      %37 = tpu.matmul %35, %36, %cst_26 {dimension_numbers = #tpu.dot_dimension_numbers<[1], [0], [0], [1], [0, 0, 1, 1], [], []>} : vector<8x24xf32>, vector<24x32xf32>, vector<8x32xf32> -> vector<8x32xf32>
      %c0_27 = arith.constant 0 : index
      %c0_28 = arith.constant 0 : index
      %38 = vector.load %arg7[%c0_27, %c0_28] : memref<8x32xf32, #tpu.memory_space<vmem>>, vector<8x32xf32>
      tpu.vector_store %arg7[%c0_27, %c0_28], %37 {strides = array<i32>} : memref<8x32xf32, #tpu.memory_space<vmem>>, vector<8x32xf32>,
      %cst_29 = arith.constant 0xFF800000 : f32
      %39 = vector.broadcast %cst_29 : f32 to vector<8x1xf32>
      %c0_30 = arith.constant 0 : index
      %c0_31 = arith.constant 0 : index
      %40 = vector.load %arg8[%c0_30, %c0_31] : memref<8x1xf32, #tpu.memory_space<vmem>>, vector<8x1xf32>
      tpu.vector_store %arg8[%c0_30, %c0_31], %39 {strides = array<i32>} : memref<8x1xf32, #tpu.memory_space<vmem>>, vector<8x1xf32>,
      %cst_32 = arith.constant 0.000000e+00 : f32
      %41 = vector.broadcast %cst_32 : f32 to vector<8x1xf32>
      %c0_33 = arith.constant 0 : index
      %c0_34 = arith.constant 0 : index
      %42 = vector.load %arg9[%c0_33, %c0_34] : memref<8x1xf32, #tpu.memory_space<vmem>>, vector<8x1xf32>
      tpu.vector_store %arg9[%c0_33, %c0_34], %41 {strides = array<i32>} : memref<8x1xf32, #tpu.memory_space<vmem>>, vector<8x1xf32>,
      %cst_35 = arith.constant 0.000000e+00 : f32
      %43 = vector.broadcast %cst_35 : f32 to vector<8x32xf32>
      %c0_36 = arith.constant 0 : index
      %c0_37 = arith.constant 0 : index
      %44 = vector.load %arg10[%c0_36, %c0_37] : memref<8x32xf32, #tpu.memory_space<vmem>>, vector<8x32xf32>
      tpu.vector_store %arg10[%c0_36, %c0_37], %43 {strides = array<i32>} : memref<8x32xf32, #tpu.memory_space<vmem>>, vector<8x32xf32>,
    } else {
    }
    %c0 = arith.constant 0 : index
    %c0_1 = arith.constant 0 : index
    %c0_2 = arith.constant 0 : index
    %3 = vector.load %arg2[%c0, %c0_1, %c0_2] : memref<8x16x32xf32, #tpu.memory_space<vmem>>, vector<8x16x32xf32>
    %c0_3 = arith.constant 0 : index
    %c0_4 = arith.constant 0 : index
    %4 = vector.load %arg7[%c0_3, %c0_4] : memref<8x32xf32, #tpu.memory_space<vmem>>, vector<8x32xf32>
    %5 = vector.shape_cast %4 : vector<8x32xf32> to vector<8x1x32xf32>
    "tpu.trace_start"() <{level = 10 : i32, message = "bqd,bjd->bqj"}> : () -> ()
    %cst = arith.constant dense<0.000000e+00> : vector<8x1x16xf32>
    %6 = tpu.matmul %5, %3, %cst {dimension_numbers = #tpu.dot_dimension_numbers<[2], [2], [1], [1], [0, 0, 0, 1, 1, 1], [0], [0]>} : vector<8x1x32xf32>, vector<8x16x32xf32>, vector<8x1x16xf32> -> vector<8x1x16xf32>
    "tpu.trace_stop"() : () -> ()
    %7 = vector.shape_cast %6 : vector<8x1x16xf32> to vector<8x16xf32>
    %c0_5 = arith.constant 0 : index
    %c0_6 = arith.constant 0 : index
    %8 = vector.load %arg8[%c0_5, %c0_6] : memref<8x1xf32, #tpu.memory_space<vmem>>, vector<8x1xf32>
    %cst_7 = arith.constant dense<0xFF800000> : vector<8xf32>
    %9 = vector.multi_reduction <maximumf>, %7, %cst_7 [1] : vector<8x16xf32> to vector<8xf32>
    %10 = vector.shape_cast %9 : vector<8xf32> to vector<8x1xf32>
    %11 = arith.maximumf %8, %10 : vector<8x1xf32>
    %12 = arith.subf %8, %11 : vector<8x1xf32>
    %13 = math.exp %12 : vector<8x1xf32>
    %14 = vector.broadcast %11 : vector<8x1xf32> to vector<8x16xf32>
    %15 = arith.subf %7, %14 : vector<8x16xf32>
    %16 = math.exp %15 : vector<8x16xf32>
    %c0_8 = arith.constant 0 : index
    %c0_9 = arith.constant 0 : index
    %17 = vector.load %arg9[%c0_8, %c0_9] : memref<8x1xf32, #tpu.memory_space<vmem>>, vector<8x1xf32>
    %18 = arith.mulf %13, %17 : vector<8x1xf32>
    %cst_10 = arith.constant dense<0.000000e+00> : vector<8xf32>
    %19 = vector.multi_reduction <add>, %16, %cst_10 [1] : vector<8x16xf32> to vector<8xf32>
    %20 = vector.shape_cast %19 : vector<8xf32> to vector<8x1xf32>
    %21 = arith.addf %18, %20 : vector<8x1xf32>
    %c0_11 = arith.constant 0 : index
    %c0_12 = arith.constant 0 : index
    %22 = vector.load %arg9[%c0_11, %c0_12] : memref<8x1xf32, #tpu.memory_space<vmem>>, vector<8x1xf32>
    tpu.vector_store %arg9[%c0_11, %c0_12], %21 {strides = array<i32>} : memref<8x1xf32, #tpu.memory_space<vmem>>, vector<8x1xf32>,
    %23 = vector.shape_cast %16 : vector<8x16xf32> to vector<8x1x16xf32>
    "tpu.trace_start"() <{level = 10 : i32, message = "bqj,bjd->bqd"}> : () -> ()
    %cst_13 = arith.constant dense<0.000000e+00> : vector<8x1x32xf32>
    %24 = tpu.matmul %23, %3, %cst_13 {dimension_numbers = #tpu.dot_dimension_numbers<[2], [1], [1], [2], [0, 0, 0, 1, 1, 2], [0], [0]>} : vector<8x1x16xf32>, vector<8x16x32xf32>, vector<8x1x32xf32> -> vector<8x1x32xf32>
    "tpu.trace_stop"() : () -> ()
    %25 = vector.shape_cast %24 : vector<8x1x32xf32> to vector<8x32xf32>
    %c0_14 = arith.constant 0 : index
    %c0_15 = arith.constant 0 : index
    %26 = vector.load %arg10[%c0_14, %c0_15] : memref<8x32xf32, #tpu.memory_space<vmem>>, vector<8x32xf32>
    %27 = vector.broadcast %13 : vector<8x1xf32> to vector<8x32xf32>
    %28 = arith.mulf %27, %26 : vector<8x32xf32>
    %29 = arith.addf %28, %25 : vector<8x32xf32>
    %c0_16 = arith.constant 0 : index
    %c0_17 = arith.constant 0 : index
    %30 = vector.load %arg10[%c0_16, %c0_17] : memref<8x32xf32, #tpu.memory_space<vmem>>, vector<8x32xf32>
    tpu.vector_store %arg10[%c0_16, %c0_17], %29 {strides = array<i32>} : memref<8x32xf32, #tpu.memory_space<vmem>>, vector<8x32xf32>,
    %c0_18 = arith.constant 0 : index
    %c0_19 = arith.constant 0 : index
    %31 = vector.load %arg8[%c0_18, %c0_19] : memref<8x1xf32, #tpu.memory_space<vmem>>, vector<8x1xf32>
    tpu.vector_store %arg8[%c0_18, %c0_19], %11 {strides = array<i32>} : memref<8x1xf32, #tpu.memory_space<vmem>>, vector<8x1xf32>,
    %c0_i32_20 = arith.constant 0 : i32
    %32 = arith.cmpi eq, %arg1, %c0_i32_20 : i32
    %33 = arith.extui %32 : i1 to i32
    %c0_i32_21 = arith.constant 0 : i32
    %34 = arith.cmpi ne, %33, %c0_i32_21 : i32
    scf.if %34 {
      %c0_22 = arith.constant 0 : index
      %c0_23 = arith.constant 0 : index
      %35 = vector.load %arg9[%c0_22, %c0_23] : memref<8x1xf32, #tpu.memory_space<vmem>>, vector<8x1xf32>
      %36 = tpu.reciprocal %35 {approx = true} : vector<8x1xf32> -> vector<8x1xf32>
      %37 = arith.mulf %35, %36 : vector<8x1xf32>
      %cst_24 = arith.constant 2.000000e+00 : f32
      %38 = vector.broadcast %cst_24 : f32 to vector<8x1xf32>
      %39 = arith.subf %38, %37 : vector<8x1xf32>
      %40 = arith.mulf %36, %39 : vector<8x1xf32>
      %c0_25 = arith.constant 0 : index
      %c0_26 = arith.constant 0 : index
      %41 = vector.load %arg10[%c0_25, %c0_26] : memref<8x32xf32, #tpu.memory_space<vmem>>, vector<8x32xf32>
      %42 = vector.broadcast %40 : vector<8x1xf32> to vector<8x32xf32>
      %43 = arith.mulf %41, %42 : vector<8x32xf32>
      %c0_27 = arith.constant 0 : index
      %c0_28 = arith.constant 0 : index
      %44 = vector.load %arg5[%c0_27, %c0_28] : memref<8x32xf32, #tpu.memory_space<vmem>>, vector<8x32xf32>
      tpu.vector_store %arg5[%c0_27, %c0_28], %43 {strides = array<i32>} : memref<8x32xf32, #tpu.memory_space<vmem>>, vector<8x32xf32>,
      %45 = vector.broadcast %40 : vector<8x1xf32> to vector<8x16xf32>
      %46 = arith.mulf %16, %45 : vector<8x16xf32>
      %c0_29 = arith.constant 0 : index
      %c0_30 = arith.constant 0 : index
      %47 = vector.load %arg6[%c0_29, %c0_30] : memref<8x16xf32, #tpu.memory_space<vmem>>, vector<8x16xf32>
      tpu.vector_store %arg6[%c0_29, %c0_30], %46 {strides = array<i32>} : memref<8x16xf32, #tpu.memory_space<vmem>>, vector<8x16xf32>,
    } else {
    }
    return
  }
  func.func @transform_0(%arg0: i32, %arg1: i32) -> (i32, i32, i32) {
    %c0_i32 = arith.constant 0 : i32
    %c0_i32_0 = arith.constant 0 : i32
    return %arg0, %arg1, %c0_i32 : i32, i32, i32
  }
  func.func @transform_1(%arg0: i32, %arg1: i32) -> (i32, i32) {
    %c0_i32 = arith.constant 0 : i32
    %c0_i32_0 = arith.constant 0 : i32
    return %arg0, %c0_i32 : i32, i32
  }
  func.func @transform_2(%arg0: i32, %arg1: i32) -> (i32, i32) {
    %c0_i32 = arith.constant 0 : i32
    %c0_i32_0 = arith.constant 0 : i32
    %c0_i32_1 = arith.constant 0 : i32
    return %c0_i32, %c0_i32_0 : i32, i32
  }
  func.func @transform_3(%arg0: i32, %arg1: i32) -> (i32, i32) {
    %c0_i32 = arith.constant 0 : i32
    %c0_i32_0 = arith.constant 0 : i32
    return %arg0, %c0_i32 : i32, i32
  }
  func.func @transform_4(%arg0: i32, %arg1: i32) -> (i32, i32) {
    %c0_i32 = arith.constant 0 : i32
    %c0_i32_0 = arith.constant 0 : i32
    return %arg0, %c0_i32 : i32, i32
  }
}

</mosaic_0001>

<llo_original>
// kernel: tpu_custom_call.1
$region0: #{tpu_custom_call.1}
  #allocation0 [shape = 'u32[]', space=smem, size = 0x4, offset = 0x4, fixed_abs, tag = 'smem constant byte address 0x4 - core index']
  #allocation1 [shape = 'u32[144,128]{1,0:T(1,128)}', space=vmem, size = 0x12000, scoped, tag = 'internal scratch']
  #allocation2 [shape = 'f32[8,32]{1,0:T(8,128)}', space=vmem, size = 0x1000, scoped, tag = 'scratch operand']
  #allocation3 [shape = 'f32[8,1]{1,0:T(8,128)}', space=vmem, size = 0x1000, scoped, tag = 'scratch operand']
  #allocation4 [shape = 'f32[8,1]{1,0:T(8,128)}', space=vmem, size = 0x1000, scoped, tag = 'scratch operand']
  #allocation5 [shape = 'f32[8,32]{1,0:T(8,128)}', space=vmem, size = 0x1000, scoped, tag = 'scratch operand']
  #allocation6 [shape = 'f32[1,8,16]{2,1,0:T(8,128)}', space=vmem, size = 0x1000, scoped, tag = 'scratch operand']
  %s0 = inlined_call_operand.hbm [shape: f32[16,16,32], index: 0, kind: input, shape index: {}]
  %s1 = inlined_call_operand.hbm [shape: f32[16,24], index: 1, kind: input, shape index: {}]
  %s2 = inlined_call_operand.hbm [shape: f32[24,32], index: 2, kind: input, shape index: {}]
  %s3 = inlined_call_operand.hbm [shape: f32[16,32], index: 3, kind: output, shape index: {0}]
  %s4 = inlined_call_operand.hbm [shape: f32[16,16], index: 4, kind: output, shape index: {1}]
  %5 = xla_tuple %s3, %s4
  %s6 = sld [smem:[#allocation0]]
  $region73: #{tpu_custom_call.1} parent=0
    _
  %s8 = ssub.s32 1, %s6
  %s9 = scalar_select 0, %s8, %s6
  $region1: #{tpu_custom_call.1} parent=0
    #allocation7 [shape = 'u8[131072]{0}', space=vmem, size = 0x20000, scoped, tag = 'input window, operand 0']
    #allocation8 [shape = 's32[2]{0}', space=sflag, size = 0x8, scoped, tag = 'scoped memory for tpu_custom_call.1']
    #allocation9 [shape = 's32[2]{0}', space=sflag, size = 0x8, scoped, tag = 'scoped memory for tpu_custom_call.1']
    #allocation10 [shape = 'u8[8192]{0}', space=vmem, size = 0x2000, scoped, tag = 'input window, operand 1']
    #allocation11 [shape = 's32[2]{0}', space=sflag, size = 0x8, scoped, tag = 'scoped memory for tpu_custom_call.1']
    #allocation12 [shape = 'u8[12288]{0}', space=vmem, size = 0x3000, scoped, tag = 'input window, operand 2, single buffered']
    #allocation13 [shape = 'u8[8192]{0}', space=vmem, size = 0x2000, scoped, tag = 'output window, operand 0']
    #allocation14 [shape = 'u8[8192]{0}', space=vmem, size = 0x2000, scoped, tag = 'output window, operand 1']
    #allocation15 [shape = 's32[2]{0}', space=sflag, size = 0x8, scoped, tag = 'scoped memory for tpu_custom_call.1']
    %10 = vsyncpa [#allocation8], 0
    %s11 = scalar_lea.sflag [#allocation8], 1
    %12 = vsyncpa %s11, 0
    %13 = vsyncpa [#allocation11], 0
    %s14 = scalar_lea.sflag [#allocation11], 1
    %15 = vsyncpa %s14, 0
    %16 = vsyncpa [#allocation9], 0
    %s17 = scalar_lea.sflag [#allocation9], 1
    %18 = vsyncpa %s17, 0
    %19 = vsyncpa [#allocation15], 0
    %s20 = scalar_lea.sflag [#allocation15], 1
    %21 = vsyncpa %s20, 0
    loop: start=0, step=1, limit=4
    $region2: #{tpu_custom_call.1} parent=1 // loop_pre_header
      _
    $region3: #{tpu_custom_call.1} parent=1 // loop_header
      %s23 = sphi 0, %s27
      %p24 = scmp.ge.s32.totalorder %s23, 4
      %s30 = sphi 0, %s42
      %s31 = sphi 0, %s38
      %s32 = sphi 0, %s30
      %s33 = sphi 0, %s31
      %s34 = sphi 0, %s32
      %s35 = sphi 0, %s33
      %s47 = sphi 0, %s49
      %s50 = sphi 0, %s47
      %s51 = sphi 0, %s50
      %s67 = sphi 0, %s51
      %s73 = sphi 0, %s75
      %s76 = sphi 0, %s73
      %s77 = sphi 0, %s76
      %s93 = sphi 0, %s77
      %s97 = sphi 0, %s97
      %s99 = sphi 0, %s97
      %s100 = sphi 0, %s99
      %s114 = sphi 0, %s100
      %s120 = sphi 0, %s122
      %s123 = sphi 0, %s120
      %s124 = sphi 0, %s123
      %s140 = sphi 0, %s124
      %s146 = sphi 0, %s148
      %s149 = sphi 0, %s146
      %s150 = sphi 0, %s149
      %s166 = sphi 0, %s150
    $region4: #{tpu_custom_call.1} parent=1 // loop_header_branch
      %26 = sbr.rel (%p24) target = $region8
    $region5: #{tpu_custom_call.1} parent=1 // loop_body
      %s28 = ssub.s32 %s23, 1
      %s29 = ssub.s32 %s23, 2
      %s36 = sadd.s32 1, %s31
      %p37 = scmp.ge.s32.totalorder %s36, 1
      %s38 = scalar_select %p37, 0, %s36
      %s39 = sadd.s32 1, %s30
      %s40 = scalar_select %p37, %s39, %s30
      %p41 = scmp.ge.s32.totalorder %s40, 2
      %s42 = scalar_select %p41, 0, %s40
      %s43 = ssub.s32 %s30, %s42
      %s44 = ssub.s32 %s31, %s38
      %s45 = sor.u32 %s43, %s44
      %p46 = scmp.eq.s32.totalorder %s45, 0
      %s48 = sadd.s32 %s47, 1
      %s49 = scalar_select %p46, %s47, %s48
      %p52 = pneg %p46
      %p53 = scmp.eq.s32.totalorder %s23, 1
      %p54 = por %p52, %p53
      %p55 = scmp.ne.s32.totalorder %s47, %s50
      %p56 = scmp.eq.s32.totalorder %s23, 0
      %p57 = por %p55, %p56
      %p58 = scmp.ne.s32.totalorder %s47, %s50
      %p59 = scmp.eq.s32.totalorder %s28, 1
      %p60 = por %p58, %p59
      %p61 = scmp.ne.s32.totalorder %s50, %s51
      %p62 = scmp.eq.s32.totalorder %s28, 0
      %p63 = por %p61, %p62
      %p64 = scmp.ne.s32.totalorder %s50, %s51
      %p65 = scmp.eq.s32.totalorder %s29, 1
      %p66 = por %p64, %p65
      %p68 = scmp.ne.s32.totalorder %s51, %s67
      %p69 = scmp.eq.s32.totalorder %s29, 0
      %p70 = por %p68, %p69
      %s71 = ssub.s32 %s30, %s42
      %p72 = scmp.eq.s32.totalorder %s71, 0
      %s74 = sadd.s32 %s73, 1
      %s75 = scalar_select %p72, %s73, %s74
      %p78 = pneg %p72
      %p79 = scmp.eq.s32.totalorder %s23, 1
      %p80 = por %p78, %p79
      %p81 = scmp.ne.s32.totalorder %s73, %s76
      %p82 = scmp.eq.s32.totalorder %s23, 0
      %p83 = por %p81, %p82
      %p84 = scmp.ne.s32.totalorder %s73, %s76
      %p85 = scmp.eq.s32.totalorder %s28, 1
      %p86 = por %p84, %p85
      %p87 = scmp.ne.s32.totalorder %s76, %s77
      %p88 = scmp.eq.s32.totalorder %s28, 0
      %p89 = por %p87, %p88
      %p90 = scmp.ne.s32.totalorder %s76, %s77
      %p91 = scmp.eq.s32.totalorder %s29, 1
      %p92 = por %p90, %p91
      %p94 = scmp.ne.s32.totalorder %s77, %s93
      %p95 = scmp.eq.s32.totalorder %s29, 0
      %p96 = por %p94, %p95
      %s98 = sadd.s32 %s97, 1
      %p101 = scmp.eq.s32.totalorder %s23, 1
      %p102 = scmp.ne.s32.totalorder %s97, %s99
      %p103 = scmp.eq.s32.totalorder %s23, 0
      %p104 = por %p102, %p103
      %p105 = scmp.ne.s32.totalorder %s97, %s99
      %p106 = scmp.eq.s32.totalorder %s28, 1
      %p107 = por %p105, %p106
      %p108 = scmp.ne.s32.totalorder %s99, %s100
      %p109 = scmp.eq.s32.totalorder %s28, 0
      %p110 = por %p108, %p109
      %p111 = scmp.ne.s32.totalorder %s99, %s100
      %p112 = scmp.eq.s32.totalorder %s29, 1
      %p113 = por %p111, %p112
      %p115 = scmp.ne.s32.totalorder %s100, %s114
      %p116 = scmp.eq.s32.totalorder %s29, 0
      %p117 = por %p115, %p116
      %s118 = ssub.s32 %s30, %s42
      %p119 = scmp.eq.s32.totalorder %s118, 0
      %s121 = sadd.s32 %s120, 1
      %s122 = scalar_select %p119, %s120, %s121
      %p125 = pneg %p119
      %p126 = scmp.eq.s32.totalorder %s23, 1
      %p127 = por %p125, %p126
      %p128 = scmp.ne.s32.totalorder %s120, %s123
      %p129 = scmp.eq.s32.totalorder %s23, 0
      %p130 = por %p128, %p129
      %p131 = scmp.ne.s32.totalorder %s120, %s123
      %p132 = scmp.eq.s32.totalorder %s28, 1
      %p133 = por %p131, %p132
      %p134 = scmp.ne.s32.totalorder %s123, %s124
      %p135 = scmp.eq.s32.totalorder %s28, 0
      %p136 = por %p134, %p135
      %p137 = scmp.ne.s32.totalorder %s123, %s124
      %p138 = scmp.eq.s32.totalorder %s29, 1
      %p139 = por %p137, %p138
      %p141 = scmp.ne.s32.totalorder %s124, %s140
      %p142 = scmp.eq.s32.totalorder %s29, 0
      %p143 = por %p141, %p142
      %s144 = ssub.s32 %s30, %s42
      %p145 = scmp.eq.s32.totalorder %s144, 0
      %s147 = sadd.s32 %s146, 1
      %s148 = scalar_select %p145, %s146, %s147
      %p151 = pneg %p145
      %p152 = scmp.eq.s32.totalorder %s23, 1
      %p153 = por %p151, %p152
      %p154 = scmp.ne.s32.totalorder %s146, %s149
      %p155 = scmp.eq.s32.totalorder %s23, 0
      %p156 = por %p154, %p155
      %p157 = scmp.ne.s32.totalorder %s146, %s149
      %p158 = scmp.eq.s32.totalorder %s28, 1
      %p159 = por %p157, %p158
      %p160 = scmp.ne.s32.totalorder %s149, %s150
      %p161 = scmp.eq.s32.totalorder %s28, 0
      %p162 = por %p160, %p161
      %p163 = scmp.ne.s32.totalorder %s149, %s150
      %p164 = scmp.eq.s32.totalorder %s29, 1
      %p165 = por %p163, %p164
      %p167 = scmp.ne.s32.totalorder %s150, %s166
      %p168 = scmp.eq.s32.totalorder %s29, 0
      %p169 = por %p167, %p168
      %p170 = scmp.le.s32.totalorder 1, %s23
      %p171 = scmp.lt.s32.totalorder %s23, 3
      %p172 = pnand %p170, %p171
      %p173 = pneg %p172
      // Predicated region
      $region9: #{tpu_custom_call.1} parent=5 // pred_check
        _
      $region10: #{tpu_custom_call.1} parent=5 // pred_check_branch
        %175 = sbr.rel (%p172) target = $region12
      $region11: #{tpu_custom_call.1} parent=5 // pred_region
        %s176 = ssub.s32 %s23, 1
        // Predicated region
        $region13: #{tpu_custom_call.1} parent=11 // pred_check
          %p177 = pneg %p110
        $region14: #{tpu_custom_call.1} parent=11 // pred_check_branch
          %179 = sbr.rel (%p177) target = $region16
        $region15: #{tpu_custom_call.1} parent=11 // pred_region
          %s181 = ssub.s32 384, 384
          %182 = vsyncadd [#allocation11], %s181
          %s183 = sshll.u32 [#allocation12], 4
          %s184 = int_to_ptr.vmem [resolvable:$true] %s183
          %189 = dma.hbm_to_vmem [thread:$0]  %s2, 384, %s184, [#allocation11], 128, 128, 8
        $region16: #{tpu_custom_call.1} parent=11 // pred_fallthru
          _
      $region12: #{tpu_custom_call.1} parent=5 // pred_fallthru
        _
      %p190 = scmp.lt.s32.totalorder %s23, 2
      // Predicated region
      $region17: #{tpu_custom_call.1} parent=5 // pred_check
        %p191 = pneg %p190
      $region18: #{tpu_custom_call.1} parent=5 // pred_check_branch
        %193 = sbr.rel (%p191) target = $region20
      $region19: #{tpu_custom_call.1} parent=5 // pred_region
        // Predicated region
        $region21: #{tpu_custom_call.1} parent=19 // pred_check
          %p194 = pneg %p57
        $region22: #{tpu_custom_call.1} parent=19 // pred_check_branch
          %196 = sbr.rel (%p194) target = $region24
        $region23: #{tpu_custom_call.1} parent=19 // pred_region
          %s197 = sand.u32 %s47, 1
          %s198 = scalar_lea.sflag [#allocation8], %s197
          %s199 = sand.u32 %s47, 1
          %s200 = smul.addr %s199, 128
          %s201 = scalar_lea.vmem [#allocation7], %s200
          %s202 = smul.u32 8, %s30
          %s203 = smul.u32 2, %s31
          %s205 = ssub.s32 2048, 2048
          %206 = vsyncadd %s198, %s205
          %s207 = smul.addr %s202, 2
          %s208 = sadd.s32 %s203, %s207
          %s209 = smul.addr %s208, 128
          %s210 = scalar_lea.hbm %s0, %s209
          %s211 = sshll.u32 %s201, 4
          %s212 = int_to_ptr.vmem [resolvable:$true] %s211
          %217 = dma.hbm_to_vmem [thread:$0]  %s210, 2048, %s212, %s198, 128, 128, 8
        $region24: #{tpu_custom_call.1} parent=19 // pred_fallthru
          _
        // Predicated region
        $region25: #{tpu_custom_call.1} parent=19 // pred_check
          %p218 = pneg %p83
        $region26: #{tpu_custom_call.1} parent=19 // pred_check_branch
          %220 = sbr.rel (%p218) target = $region28
        $region27: #{tpu_custom_call.1} parent=19 // pred_region
          %s221 = sand.u32 %s23, 1
          %s222 = scalar_lea.sflag [#allocation11], %s221
          %s223 = sand.u32 %s73, 1
          %s224 = smul.addr %s223, 8
          %s225 = scalar_lea.vmem [#allocation10], %s224
          %s227 = ssub.s32 128, 128
          %228 = vsyncadd %s222, %s227
          %s229 = smul.addr %s30, 128
          %s230 = scalar_lea.hbm %s1, %s229
          %s232 = sshll.u32 %s225, 4
          %s233 = int_to_ptr.vmem [resolvable:$true] %s232
          %235 = dma.hbm_to_vmem [thread:$0]  %s230, 128, %s233, %s222
        $region28: #{tpu_custom_call.1} parent=19 // pred_fallthru
          _
      $region20: #{tpu_custom_call.1} parent=5 // pred_fallthru
        _
      %p236 = scmp.le.s32.totalorder 1, %s23
      %p237 = scmp.lt.s32.totalorder %s23, 3
      %p238 = pnand %p236, %p237
      %p239 = pneg %p238
      // Predicated region
      $region29: #{tpu_custom_call.1} parent=5 // pred_check
        _
      $region30: #{tpu_custom_call.1} parent=5 // pred_check_branch
        %241 = sbr.rel (%p238) target = $region32
      $region31: #{tpu_custom_call.1} parent=5 // pred_region
        %s242 = ssub.s32 %s23, 1
        %s243 = sand.u32 %s50, 1
        %s244 = scalar_lea.sflag [#allocation8], %s243
        %s245 = sand.u32 %s50, 1
        %s246 = smul.addr %s245, 128
        %s247 = scalar_lea.vmem [#allocation7], %s246
        // Predicated region
        $region33: #{tpu_custom_call.1} parent=31 // pred_check
          %p248 = pneg %p63
        $region34: #{tpu_custom_call.1} parent=31 // pred_check_branch
          %250 = sbr.rel (%p248) target = $region36
        $region35: #{tpu_custom_call.1} parent=31 // pred_region
          %251 = dma.done %s244, 2048
        $region36: #{tpu_custom_call.1} parent=31 // pred_fallthru
          _
        %s252 = sand.u32 %s28, 1
        %s253 = scalar_lea.sflag [#allocation11], %s252
        %s254 = sand.u32 %s76, 1
        %s255 = smul.addr %s254, 8
        %s256 = scalar_lea.vmem [#allocation10], %s255
        // Predicated region
        $region37: #{tpu_custom_call.1} parent=31 // pred_check
          %p257 = pneg %p89
        $region38: #{tpu_custom_call.1} parent=31 // pred_check_branch
          %259 = sbr.rel (%p257) target = $region40
        $region39: #{tpu_custom_call.1} parent=31 // pred_region
          %260 = dma.done %s253, 128
        $region40: #{tpu_custom_call.1} parent=31 // pred_fallthru
          _
        // Predicated region
        $region41: #{tpu_custom_call.1} parent=31 // pred_check
          %p261 = pneg %p110
        $region42: #{tpu_custom_call.1} parent=31 // pred_check_branch
          %263 = sbr.rel (%p261) target = $region44
        $region43: #{tpu_custom_call.1} parent=31 // pred_region
          %264 = dma.done [#allocation11], 384
        $region44: #{tpu_custom_call.1} parent=31 // pred_fallthru
          _
        %s265 = sand.u32 %s50, 1
        %s266 = scalar_lea.sflag [#allocation8], %s265
        %s267 = sand.u32 %s50, 1
        %s268 = smul.addr %s267, 128
        %s269 = scalar_lea.vmem [#allocation7], %s268
        %p270 = pneg %p63
        %p271 = pneg %p60
        %s272 = sand.u32 %s28, 1
        %s273 = scalar_lea.sflag [#allocation11], %s272
        %s274 = sand.u32 %s76, 1
        %s275 = smul.addr %s274, 8
        %s276 = scalar_lea.vmem [#allocation10], %s275
        %p277 = pneg %p89
        %p278 = pneg %p86
        %p279 = pneg %p110
        %p280 = pneg %p107
        %p281 = pneg %p136
        %p282 = pneg %p133
        %s283 = sand.u32 %s123, 1
        %s284 = scalar_lea.sflag [#allocation9], %s283
        %s285 = sand.u32 %s123, 1
        %s286 = smul.addr %s285, 8
        %s287 = scalar_lea.vmem [#allocation13], %s286
        %p288 = pneg %p162
        %p289 = pneg %p159
        %s290 = sand.u32 %s149, 1
        %s291 = scalar_lea.sflag [#allocation15], %s290
        %s292 = sand.u32 %s149, 1
        %s293 = smul.addr %s292, 8
        %s294 = scalar_lea.vmem [#allocation14], %s293
        %s295 = smul.u32 8, %s32
        %s296 = smul.u32 2, %s33
        %p297 = scmp.eq.s32.totalorder %s33, 0
        // Predicated region
        $region45: #{tpu_custom_call.1} parent=31 // pred_check
          %p298 = pneg %p297
        $region46: #{tpu_custom_call.1} parent=31 // pred_check_branch
          %300 = sbr.rel (%p298) target = $region48
        $region47: #{tpu_custom_call.1} parent=31 // pred_region
          %v301 = vld [vmem:[%s256] sm:$0xff]
          %v302 = vld [vmem:[#allocation12] sm:$0xff]
          %v303 = vld [vmem:[#allocation12 + $0x8] sm:$0xff]
          %v304 = vld [vmem:[#allocation12 + $0x10] sm:$0xff]
          %vm305 = vcmask 195584
          %v307 = vsel %vm305, %v301, 0
          %309 = vmatprep.subr.mxu0 0.0
          %310 = vmatpush1.msra.mxu0 0.0
          %311 = vmatprep.subr.mxu0 0.0
          %312 = vmatpush1.msra.mxu0 0.0
          %313 = vmatprep.subr.mxu0 0.0
          %314 = vmatpush1.msra.mxu0 0.0
          %315 = vmatprep.subr.mxu0 0.0
          %316 = vmatpush1.msra.mxu0 0.0
          %317 = vmatprep.subr.mxu0 0.0
          %318 = vmatpush1.msra.mxu0 0.0
          %319 = vmatprep.subr.mxu0 0.0
          %320 = vmatpush1.msra.mxu0 0.0
          %321 = vmatprep.subr.mxu0 0.0
          %322 = vmatpush1.msra.mxu0 0.0
          %323 = vmatprep.subr.mxu0 0.0
          %324 = vmatpush1.msra.mxu0 0.0
          %325 = vmatprep.subr.mxu0 0.0
          %326 = vmatpush1.msra.mxu0 0.0
          %327 = vmatprep.subr.mxu0 0.0
          %328 = vmatpush1.msra.mxu0 0.0
          %329 = vmatprep.subr.mxu0 0.0
          %330 = vmatpush1.msra.mxu0 0.0
          %331 = vmatprep.subr.mxu0 0.0
          %332 = vmatpush1.msra.mxu0 0.0
          %333 = vmatprep.subr.mxu0 0.0
          %334 = vmatpush1.msra.mxu0 0.0
          %335 = vmatprep.subr.mxu0 0.0
          %336 = vmatpush1.msra.mxu0 %v304
          %337 = vmatprep.subr.mxu0 0.0
          %338 = vmatpush1.msra.mxu0 %v303
          %339 = vmatprep.subr.mxu0 0.0
          %340 = vmatpush1.msra.mxu0 %v302
          %341 = vmatprep.subr.mxu0 0.0
          %342 = vmatpush2.msra.mxu0 0.0
          %343 = vmatprep.subr.mxu0 0.0
          %344 = vmatpush2.msra.mxu0 0.0
          %345 = vmatprep.subr.mxu0 0.0
          %346 = vmatpush2.msra.mxu0 0.0
          %347 = vmatprep.subr.mxu0 0.0
          %348 = vmatpush2.msra.mxu0 0.0
          %349 = vmatprep.subr.mxu0 0.0
          %350 = vmatpush2.msra.mxu0 0.0
          %351 = vmatprep.subr.mxu0 0.0
          %352 = vmatpush2.msra.mxu0 0.0
          %353 = vmatprep.subr.mxu0 0.0
          %354 = vmatpush2.msra.mxu0 0.0
          %355 = vmatprep.subr.mxu0 0.0
          %356 = vmatpush2.msra.mxu0 0.0
          %357 = vmatprep.subr.mxu0 0.0
          %358 = vmatpush2.msra.mxu0 0.0
          %359 = vmatprep.subr.mxu0 0.0
          %360 = vmatpush2.msra.mxu0 0.0
          %361 = vmatprep.subr.mxu0 0.0
          %362 = vmatpush2.msra.mxu0 0.0
          %363 = vmatprep.subr.mxu0 0.0
          %364 = vmatpush2.msra.mxu0 0.0
          %365 = vmatprep.subr.mxu0 0.0
          %366 = vmatpush2.msra.mxu0 0.0
          %367 = vmatprep.subr.mxu0 0.0
          %368 = vmatpush2.msra.mxu0 0.0
          %369 = vmatprep.subr.mxu0 0.0
          %370 = vmatpush2.msra.mxu0 0.0
          %371 = vmatprep.subr.mxu0 0.0
          %372 = vmatpush2.msra.mxu0 0.0
          %373 = vmatprep.mubr.f32.mxu0 0.0
          %374 = vmatmul.mubr.f32.gmra.mxu0 %v307
          %v375 = vpop.f32.mrf.mxu0
          %v376 = vadd.f32 0.0, %v375
          %v377 = vpop.f32.mrf.mxu0
          %378 = vdwg.mxu0
          %vm379 = vcmask 261120
          %380 = vst.msk [vmem:[#allocation2] sm:$0xff] %vm379, %v376
          %vm381 = vcmask 7168
          %382 = vst.msk [vmem:[#allocation3] sm:$0xff] %vm381, -inf
          %383 = vst.msk [vmem:[#allocation4] sm:$0xff] %vm381, 0.0
          %384 = vst.msk [vmem:[#allocation5] sm:$0xff] %vm379, 0.0
        $region48: #{tpu_custom_call.1} parent=31 // pred_fallthru
          _
        %v385 = vld [vmem:[%s247] sm:$0xff]
        %v386 = vld [vmem:[%s247 + $0x8] sm:$0xff]
        %v387 = vld [vmem:[%s247 + $0x10] sm:$0xff]
        %v388 = vld [vmem:[%s247 + $0x18] sm:$0xff]
        %v389 = vld [vmem:[%s247 + $0x20] sm:$0xff]
        %v390 = vld [vmem:[%s247 + $0x28] sm:$0xff]
        %v391 = vld [vmem:[%s247 + $0x30] sm:$0xff]
        %v392 = vld [vmem:[%s247 + $0x38] sm:$0xff]
        %v393 = vld [vmem:[%s247 + $0x40] sm:$0xff]
        %v394 = vld [vmem:[%s247 + $0x48] sm:$0xff]
        %v395 = vld [vmem:[%s247 + $0x50] sm:$0xff]
        %v396 = vld [vmem:[%s247 + $0x58] sm:$0xff]
        %v397 = vld [vmem:[%s247 + $0x60] sm:$0xff]
        %v398 = vld [vmem:[%s247 + $0x68] sm:$0xff]
        %v399 = vld [vmem:[%s247 + $0x70] sm:$0xff]
        %v400 = vld [vmem:[%s247 + $0x78] sm:$0xff]
        %v401 = vld [vmem:[#allocation2] sm:$0xff]
        %v403 = vcombine.high %v401, %v401
        %v405 = vunpack.c.l.s4 1966171168
        %v406 = vunpack.c.0.s8 %v405
        %v407 = vlaneseq
        %v408 = vshrl.u32 %v407, 7
        %v409 = vsub.s32 %v406, %v408
        %v410 = vrot.slane %v401, %v409
        %v412 = vunpack.c.l.s4 1966171168
        %v413 = vunpack.c.0.s8 %v412
        %v414 = vlaneseq
        %v415 = vshrl.u32 %v414, 7
        %v416 = vsub.s32 %v413, %v415
        %v417 = vrot.slane %v403, %v416
        %v418 = vcombine.high %v410, %v410
        %v419 = vcombine.high %v417, %v417
        %v421 = vunpack.c.l.s4 1966171168
        %v422 = vunpack.c.0.s8 %v421
        %v423 = vlaneseq
        %v424 = vshrl.u32 %v423, 7
        %v425 = vsub.s32 %v422, %v424
        %v426 = vrot.slane %v410, %v425
        %v428 = vunpack.c.l.s4 1966171168
        %v429 = vunpack.c.0.s8 %v428
        %v430 = vlaneseq
        %v431 = vshrl.u32 %v430, 7
        %v432 = vsub.s32 %v429, %v431
        %v433 = vrot.slane %v417, %v432
        %v435 = vunpack.c.l.s4 1966171168
        %v436 = vunpack.c.0.s8 %v435
        %v437 = vlaneseq
        %v438 = vshrl.u32 %v437, 7
        %v439 = vsub.s32 %v436, %v438
        %v440 = vrot.slane %v418, %v439
        %v442 = vunpack.c.l.s4 1966171168
        %v443 = vunpack.c.0.s8 %v442
        %v444 = vlaneseq
        %v445 = vshrl.u32 %v444, 7
        %v446 = vsub.s32 %v443, %v445
        %v447 = vrot.slane %v419, %v446
        %v448 = vcombine.high %v426, %v426
        %v449 = vcombine.high %v433, %v433
        %v450 = vcombine.high %v440, %v440
        %v451 = vcombine.high %v447, %v447
        %vm452 = vcmask 261120
        %v453 = vsel %vm452, %v426, 0
        %v456 = vsel %vm452, %v385, 0
        %v459 = vsel %vm452, %v386, 0
        %461 = vmatprep.subr.mxu0 0.0
        %462 = vmatpush1.xpose.msra.mxu0 0.0
        %463 = vmatprep.subr.mxu0 0.0
        %464 = vmatpush1.xpose.msra.mxu0 0.0
        %465 = vmatprep.subr.mxu0 0.0
        %466 = vmatpush1.xpose.msra.mxu0 0.0
        %467 = vmatprep.subr.mxu0 0.0
        %468 = vmatpush1.xpose.msra.mxu0 0.0
        %469 = vmatprep.subr.mxu0 0.0
        %470 = vmatpush1.xpose.msra.mxu0 0.0
        %471 = vmatprep.subr.mxu0 0.0
        %472 = vmatpush1.xpose.msra.mxu0 0.0
        %473 = vmatprep.subr.mxu0 0.0
        %474 = vmatpush1.xpose.msra.mxu0 0.0
        %475 = vmatprep.subr.mxu0 0.0
        %476 = vmatpush1.xpose.msra.mxu0 0.0
        %477 = vmatprep.subr.mxu0 0.0
        %478 = vmatpush1.xpose.msra.mxu0 0.0
        %479 = vmatprep.subr.mxu0 0.0
        %480 = vmatpush1.xpose.msra.mxu0 0.0
        %481 = vmatprep.subr.mxu0 0.0
        %482 = vmatpush1.xpose.msra.mxu0 0.0
        %483 = vmatprep.subr.mxu0 0.0
        %484 = vmatpush1.xpose.msra.mxu0 0.0
        %485 = vmatprep.subr.mxu0 0.0
        %486 = vmatpush1.xpose.msra.mxu0 0.0
        %487 = vmatprep.subr.mxu0 0.0
        %488 = vmatpush1.xpose.msra.mxu0 0.0
        %489 = vmatprep.subr.mxu0 0.0
        %490 = vmatpush1.xpose.msra.mxu0 %v459
        %491 = vmatprep.subr.mxu0 0.0
        %492 = vmatpush1.xpose.msra.mxu0 %v456
        %493 = vmatprep.subr.mxu0 0.0
        %494 = vmatpush2.xpose.msra.mxu0 0.0
        %495 = vmatprep.subr.mxu0 0.0
        %496 = vmatpush2.xpose.msra.mxu0 0.0
        %497 = vmatprep.subr.mxu0 0.0
        %498 = vmatpush2.xpose.msra.mxu0 0.0
        %499 = vmatprep.subr.mxu0 0.0
        %500 = vmatpush2.xpose.msra.mxu0 0.0
        %501 = vmatprep.subr.mxu0 0.0
        %502 = vmatpush2.xpose.msra.mxu0 0.0
        %503 = vmatprep.subr.mxu0 0.0
        %504 = vmatpush2.xpose.msra.mxu0 0.0
        %505 = vmatprep.subr.mxu0 0.0
        %506 = vmatpush2.xpose.msra.mxu0 0.0
        %507 = vmatprep.subr.mxu0 0.0
        %508 = vmatpush2.xpose.msra.mxu0 0.0
        %509 = vmatprep.subr.mxu0 0.0
        %510 = vmatpush2.xpose.msra.mxu0 0.0
        %511 = vmatprep.subr.mxu0 0.0
        %512 = vmatpush2.xpose.msra.mxu0 0.0
        %513 = vmatprep.subr.mxu0 0.0
        %514 = vmatpush2.xpose.msra.mxu0 0.0
        %515 = vmatprep.subr.mxu0 0.0
        %516 = vmatpush2.xpose.msra.mxu0 0.0
        %517 = vmatprep.subr.mxu0 0.0
        %518 = vmatpush2.xpose.msra.mxu0 0.0
        %519 = vmatprep.subr.mxu0 0.0
        %520 = vmatpush2.xpose.msra.mxu0 0.0
        %521 = vmatprep.subr.mxu0 0.0
        %522 = vmatpush2.xpose.msra.mxu0 0.0
        %523 = vmatprep.subr.mxu0 0.0
        %524 = vmatpush2.xpose.msra.mxu0 0.0
        %525 = vmatprep.mubr.f32.mxu0 0.0
        %526 = vmatmul.mubr.f32.gmra.mxu0 %v453
        %v527 = vpop.f32.mrf.mxu0
        %v528 = vadd.f32 0.0, %v527
        %v529 = vpop.f32.mrf.mxu0
        %530 = vdwg.mxu0
        %v531 = vsel %vm452, %v440, 0
        %v534 = vsel %vm452, %v387, 0
        %v537 = vsel %vm452, %v388, 0
        %539 = vmatprep.subr.mxu0 0.0
        %540 = vmatpush1.xpose.msra.mxu0 0.0
        %541 = vmatprep.subr.mxu0 0.0
        %542 = vmatpush1.xpose.msra.mxu0 0.0
        %543 = vmatprep.subr.mxu0 0.0
        %544 = vmatpush1.xpose.msra.mxu0 0.0
        %545 = vmatprep.subr.mxu0 0.0
        %546 = vmatpush1.xpose.msra.mxu0 0.0
        %547 = vmatprep.subr.mxu0 0.0
        %548 = vmatpush1.xpose.msra.mxu0 0.0
        %549 = vmatprep.subr.mxu0 0.0
        %550 = vmatpush1.xpose.msra.mxu0 0.0
        %551 = vmatprep.subr.mxu0 0.0
        %552 = vmatpush1.xpose.msra.mxu0 0.0
        %553 = vmatprep.subr.mxu0 0.0
        %554 = vmatpush1.xpose.msra.mxu0 0.0
        %555 = vmatprep.subr.mxu0 0.0
        %556 = vmatpush1.xpose.msra.mxu0 0.0
        %557 = vmatprep.subr.mxu0 0.0
        %558 = vmatpush1.xpose.msra.mxu0 0.0
        %559 = vmatprep.subr.mxu0 0.0
        %560 = vmatpush1.xpose.msra.mxu0 0.0
        %561 = vmatprep.subr.mxu0 0.0
        %562 = vmatpush1.xpose.msra.mxu0 0.0
        %563 = vmatprep.subr.mxu0 0.0
        %564 = vmatpush1.xpose.msra.mxu0 0.0
        %565 = vmatprep.subr.mxu0 0.0
        %566 = vmatpush1.xpose.msra.mxu0 0.0
        %567 = vmatprep.subr.mxu0 0.0
        %568 = vmatpush1.xpose.msra.mxu0 %v537
        %569 = vmatprep.subr.mxu0 0.0
        %570 = vmatpush1.xpose.msra.mxu0 %v534
        %571 = vmatprep.subr.mxu0 0.0
        %572 = vmatpush2.xpose.msra.mxu0 0.0
        %573 = vmatprep.subr.mxu0 0.0
        %574 = vmatpush2.xpose.msra.mxu0 0.0
        %575 = vmatprep.subr.mxu0 0.0
        %576 = vmatpush2.xpose.msra.mxu0 0.0
        %577 = vmatprep.subr.mxu0 0.0
        %578 = vmatpush2.xpose.msra.mxu0 0.0
        %579 = vmatprep.subr.mxu0 0.0
        %580 = vmatpush2.xpose.msra.mxu0 0.0
        %581 = vmatprep.subr.mxu0 0.0
        %582 = vmatpush2.xpose.msra.mxu0 0.0
        %583 = vmatprep.subr.mxu0 0.0
        %584 = vmatpush2.xpose.msra.mxu0 0.0
        %585 = vmatprep.subr.mxu0 0.0
        %586 = vmatpush2.xpose.msra.mxu0 0.0
        %587 = vmatprep.subr.mxu0 0.0
        %588 = vmatpush2.xpose.msra.mxu0 0.0
        %589 = vmatprep.subr.mxu0 0.0
        %590 = vmatpush2.xpose.msra.mxu0 0.0
        %591 = vmatprep.subr.mxu0 0.0
        %592 = vmatpush2.xpose.msra.mxu0 0.0
        %593 = vmatprep.subr.mxu0 0.0
        %594 = vmatpush2.xpose.msra.mxu0 0.0
        %595 = vmatprep.subr.mxu0 0.0
        %596 = vmatpush2.xpose.msra.mxu0 0.0
        %597 = vmatprep.subr.mxu0 0.0
        %598 = vmatpush2.xpose.msra.mxu0 0.0
        %599 = vmatprep.subr.mxu0 0.0
        %600 = vmatpush2.xpose.msra.mxu0 0.0
        %601 = vmatprep.subr.mxu0 0.0
        %602 = vmatpush2.xpose.msra.mxu0 0.0
        %603 = vmatprep.mubr.f32.mxu0 0.0
        %604 = vmatmul.mubr.f32.gmra.mxu0 %v531
        %v605 = vpop.f32.mrf.mxu0
        %v606 = vadd.f32 0.0, %v605
        %v607 = vpop.f32.mrf.mxu0
        %608 = vdwg.mxu0
        %v609 = vsel %vm452, %v448, 0
        %v612 = vsel %vm452, %v389, 0
        %v615 = vsel %vm452, %v390, 0
        %617 = vmatprep.subr.mxu0 0.0
        %618 = vmatpush1.xpose.msra.mxu0 0.0
        %619 = vmatprep.subr.mxu0 0.0
        %620 = vmatpush1.xpose.msra.mxu0 0.0
        %621 = vmatprep.subr.mxu0 0.0
        %622 = vmatpush1.xpose.msra.mxu0 0.0
        %623 = vmatprep.subr.mxu0 0.0
        %624 = vmatpush1.xpose.msra.mxu0 0.0
        %625 = vmatprep.subr.mxu0 0.0
        %626 = vmatpush1.xpose.msra.mxu0 0.0
        %627 = vmatprep.subr.mxu0 0.0
        %628 = vmatpush1.xpose.msra.mxu0 0.0
        %629 = vmatprep.subr.mxu0 0.0
        %630 = vmatpush1.xpose.msra.mxu0 0.0
        %631 = vmatprep.subr.mxu0 0.0
        %632 = vmatpush1.xpose.msra.mxu0 0.0
        %633 = vmatprep.subr.mxu0 0.0
        %634 = vmatpush1.xpose.msra.mxu0 0.0
        %635 = vmatprep.subr.mxu0 0.0
        %636 = vmatpush1.xpose.msra.mxu0 0.0
        %637 = vmatprep.subr.mxu0 0.0
        %638 = vmatpush1.xpose.msra.mxu0 0.0
        %639 = vmatprep.subr.mxu0 0.0
        %640 = vmatpush1.xpose.msra.mxu0 0.0
        %641 = vmatprep.subr.mxu0 0.0
        %642 = vmatpush1.xpose.msra.mxu0 0.0
        %643 = vmatprep.subr.mxu0 0.0
        %644 = vmatpush1.xpose.msra.mxu0 0.0
        %645 = vmatprep.subr.mxu0 0.0
        %646 = vmatpush1.xpose.msra.mxu0 %v615
        %647 = vmatprep.subr.mxu0 0.0
        %648 = vmatpush1.xpose.msra.mxu0 %v612
        %649 = vmatprep.subr.mxu0 0.0
        %650 = vmatpush2.xpose.msra.mxu0 0.0
        %651 = vmatprep.subr.mxu0 0.0
        %652 = vmatpush2.xpose.msra.mxu0 0.0
        %653 = vmatprep.subr.mxu0 0.0
        %654 = vmatpush2.xpose.msra.mxu0 0.0
        %655 = vmatprep.subr.mxu0 0.0
        %656 = vmatpush2.xpose.msra.mxu0 0.0
        %657 = vmatprep.subr.mxu0 0.0
        %658 = vmatpush2.xpose.msra.mxu0 0.0
        %659 = vmatprep.subr.mxu0 0.0
        %660 = vmatpush2.xpose.msra.mxu0 0.0
        %661 = vmatprep.subr.mxu0 0.0
        %662 = vmatpush2.xpose.msra.mxu0 0.0
        %663 = vmatprep.subr.mxu0 0.0
        %664 = vmatpush2.xpose.msra.mxu0 0.0
        %665 = vmatprep.subr.mxu0 0.0
        %666 = vmatpush2.xpose.msra.mxu0 0.0
        %667 = vmatprep.subr.mxu0 0.0
        %668 = vmatpush2.xpose.msra.mxu0 0.0
        %669 = vmatprep.subr.mxu0 0.0
        %670 = vmatpush2.xpose.msra.mxu0 0.0
        %671 = vmatprep.subr.mxu0 0.0
        %672 = vmatpush2.xpose.msra.mxu0 0.0
        %673 = vmatprep.subr.mxu0 0.0
        %674 = vmatpush2.xpose.msra.mxu0 0.0
        %675 = vmatprep.subr.mxu0 0.0
        %676 = vmatpush2.xpose.msra.mxu0 0.0
        %677 = vmatprep.subr.mxu0 0.0
        %678 = vmatpush2.xpose.msra.mxu0 0.0
        %679 = vmatprep.subr.mxu0 0.0
        %680 = vmatpush2.xpose.msra.mxu0 0.0
        %681 = vmatprep.mubr.f32.mxu0 0.0
        %682 = vmatmul.mubr.f32.gmra.mxu0 %v609
        %v683 = vpop.f32.mrf.mxu0
        %v684 = vadd.f32 0.0, %v683
        %v685 = vpop.f32.mrf.mxu0
        %686 = vdwg.mxu0
        %v687 = vsel %vm452, %v450, 0
        %v690 = vsel %vm452, %v391, 0
        %v693 = vsel %vm452, %v392, 0
        %695 = vmatprep.subr.mxu0 0.0
        %696 = vmatpush1.xpose.msra.mxu0 0.0
        %697 = vmatprep.subr.mxu0 0.0
        %698 = vmatpush1.xpose.msra.mxu0 0.0
        %699 = vmatprep.subr.mxu0 0.0
        %700 = vmatpush1.xpose.msra.mxu0 0.0
        %701 = vmatprep.subr.mxu0 0.0
        %702 = vmatpush1.xpose.msra.mxu0 0.0
        %703 = vmatprep.subr.mxu0 0.0
        %704 = vmatpush1.xpose.msra.mxu0 0.0
        %705 = vmatprep.subr.mxu0 0.0
        %706 = vmatpush1.xpose.msra.mxu0 0.0
        %707 = vmatprep.subr.mxu0 0.0
        %708 = vmatpush1.xpose.msra.mxu0 0.0
        %709 = vmatprep.subr.mxu0 0.0
        %710 = vmatpush1.xpose.msra.mxu0 0.0
        %711 = vmatprep.subr.mxu0 0.0
        %712 = vmatpush1.xpose.msra.mxu0 0.0
        %713 = vmatprep.subr.mxu0 0.0
        %714 = vmatpush1.xpose.msra.mxu0 0.0
        %715 = vmatprep.subr.mxu0 0.0
        %716 = vmatpush1.xpose.msra.mxu0 0.0
        %717 = vmatprep.subr.mxu0 0.0
        %718 = vmatpush1.xpose.msra.mxu0 0.0
        %719 = vmatprep.subr.mxu0 0.0
        %720 = vmatpush1.xpose.msra.mxu0 0.0
        %721 = vmatprep.subr.mxu0 0.0
        %722 = vmatpush1.xpose.msra.mxu0 0.0
        %723 = vmatprep.subr.mxu0 0.0
        %724 = vmatpush1.xpose.msra.mxu0 %v693
        %725 = vmatprep.subr.mxu0 0.0
        %726 = vmatpush1.xpose.msra.mxu0 %v690
        %727 = vmatprep.subr.mxu0 0.0
        %728 = vmatpush2.xpose.msra.mxu0 0.0
        %729 = vmatprep.subr.mxu0 0.0
        %730 = vmatpush2.xpose.msra.mxu0 0.0
        %731 = vmatprep.subr.mxu0 0.0
        %732 = vmatpush2.xpose.msra.mxu0 0.0
        %733 = vmatprep.subr.mxu0 0.0
        %734 = vmatpush2.xpose.msra.mxu0 0.0
        %735 = vmatprep.subr.mxu0 0.0
        %736 = vmatpush2.xpose.msra.mxu0 0.0
        %737 = vmatprep.subr.mxu0 0.0
        %738 = vmatpush2.xpose.msra.mxu0 0.0
        %739 = vmatprep.subr.mxu0 0.0
        %740 = vmatpush2.xpose.msra.mxu0 0.0
        %741 = vmatprep.subr.mxu0 0.0
        %742 = vmatpush2.xpose.msra.mxu0 0.0
        %743 = vmatprep.subr.mxu0 0.0
        %744 = vmatpush2.xpose.msra.mxu0 0.0
        %745 = vmatprep.subr.mxu0 0.0
        %746 = vmatpush2.xpose.msra.mxu0 0.0
        %747 = vmatprep.subr.mxu0 0.0
        %748 = vmatpush2.xpose.msra.mxu0 0.0
        %749 = vmatprep.subr.mxu0 0.0
        %750 = vmatpush2.xpose.msra.mxu0 0.0
        %751 = vmatprep.subr.mxu0 0.0
        %752 = vmatpush2.xpose.msra.mxu0 0.0
        %753 = vmatprep.subr.mxu0 0.0
        %754 = vmatpush2.xpose.msra.mxu0 0.0
        %755 = vmatprep.subr.mxu0 0.0
        %756 = vmatpush2.xpose.msra.mxu0 0.0
        %757 = vmatprep.subr.mxu0 0.0
        %758 = vmatpush2.xpose.msra.mxu0 0.0
        %759 = vmatprep.mubr.f32.mxu0 0.0
        %760 = vmatmul.mubr.f32.gmra.mxu0 %v687
        %v761 = vpop.f32.mrf.mxu0
        %v762 = vadd.f32 0.0, %v761
        %v763 = vpop.f32.mrf.mxu0
        %764 = vdwg.mxu0
        %v765 = vsel %vm452, %v433, 0
        %v768 = vsel %vm452, %v393, 0
        %v771 = vsel %vm452, %v394, 0
        %773 = vmatprep.subr.mxu0 0.0
        %774 = vmatpush1.xpose.msra.mxu0 0.0
        %775 = vmatprep.subr.mxu0 0.0
        %776 = vmatpush1.xpose.msra.mxu0 0.0
        %777 = vmatprep.subr.mxu0 0.0
        %778 = vmatpush1.xpose.msra.mxu0 0.0
        %779 = vmatprep.subr.mxu0 0.0
        %780 = vmatpush1.xpose.msra.mxu0 0.0
        %781 = vmatprep.subr.mxu0 0.0
        %782 = vmatpush1.xpose.msra.mxu0 0.0
        %783 = vmatprep.subr.mxu0 0.0
        %784 = vmatpush1.xpose.msra.mxu0 0.0
        %785 = vmatprep.subr.mxu0 0.0
        %786 = vmatpush1.xpose.msra.mxu0 0.0
        %787 = vmatprep.subr.mxu0 0.0
        %788 = vmatpush1.xpose.msra.mxu0 0.0
        %789 = vmatprep.subr.mxu0 0.0
        %790 = vmatpush1.xpose.msra.mxu0 0.0
        %791 = vmatprep.subr.mxu0 0.0
        %792 = vmatpush1.xpose.msra.mxu0 0.0
        %793 = vmatprep.subr.mxu0 0.0
        %794 = vmatpush1.xpose.msra.mxu0 0.0
        %795 = vmatprep.subr.mxu0 0.0
        %796 = vmatpush1.xpose.msra.mxu0 0.0
        %797 = vmatprep.subr.mxu0 0.0
        %798 = vmatpush1.xpose.msra.mxu0 0.0
        %799 = vmatprep.subr.mxu0 0.0
        %800 = vmatpush1.xpose.msra.mxu0 0.0
        %801 = vmatprep.subr.mxu0 0.0
        %802 = vmatpush1.xpose.msra.mxu0 %v771
        %803 = vmatprep.subr.mxu0 0.0
        %804 = vmatpush1.xpose.msra.mxu0 %v768
        %805 = vmatprep.subr.mxu0 0.0
        %806 = vmatpush2.xpose.msra.mxu0 0.0
        %807 = vmatprep.subr.mxu0 0.0
        %808 = vmatpush2.xpose.msra.mxu0 0.0
        %809 = vmatprep.subr.mxu0 0.0
        %810 = vmatpush2.xpose.msra.mxu0 0.0
        %811 = vmatprep.subr.mxu0 0.0
        %812 = vmatpush2.xpose.msra.mxu0 0.0
        %813 = vmatprep.subr.mxu0 0.0
        %814 = vmatpush2.xpose.msra.mxu0 0.0
        %815 = vmatprep.subr.mxu0 0.0
        %816 = vmatpush2.xpose.msra.mxu0 0.0
        %817 = vmatprep.subr.mxu0 0.0
        %818 = vmatpush2.xpose.msra.mxu0 0.0
        %819 = vmatprep.subr.mxu0 0.0
        %820 = vmatpush2.xpose.msra.mxu0 0.0
        %821 = vmatprep.subr.mxu0 0.0
        %822 = vmatpush2.xpose.msra.mxu0 0.0
        %823 = vmatprep.subr.mxu0 0.0
        %824 = vmatpush2.xpose.msra.mxu0 0.0
        %825 = vmatprep.subr.mxu0 0.0
        %826 = vmatpush2.xpose.msra.mxu0 0.0
        %827 = vmatprep.subr.mxu0 0.0
        %828 = vmatpush2.xpose.msra.mxu0 0.0
        %829 = vmatprep.subr.mxu0 0.0
        %830 = vmatpush2.xpose.msra.mxu0 0.0
        %831 = vmatprep.subr.mxu0 0.0
        %832 = vmatpush2.xpose.msra.mxu0 0.0
        %833 = vmatprep.subr.mxu0 0.0
        %834 = vmatpush2.xpose.msra.mxu0 0.0
        %835 = vmatprep.subr.mxu0 0.0
        %836 = vmatpush2.xpose.msra.mxu0 0.0
        %837 = vmatprep.mubr.f32.mxu0 0.0
        %838 = vmatmul.mubr.f32.gmra.mxu0 %v765
        %v839 = vpop.f32.mrf.mxu0
        %v840 = vadd.f32 0.0, %v839
        %v841 = vpop.f32.mrf.mxu0
        %842 = vdwg.mxu0
        %v843 = vsel %vm452, %v447, 0
        %v846 = vsel %vm452, %v395, 0
        %v849 = vsel %vm452, %v396, 0
        %851 = vmatprep.subr.mxu0 0.0
        %852 = vmatpush1.xpose.msra.mxu0 0.0
        %853 = vmatprep.subr.mxu0 0.0
        %854 = vmatpush1.xpose.msra.mxu0 0.0
        %855 = vmatprep.subr.mxu0 0.0
        %856 = vmatpush1.xpose.msra.mxu0 0.0
        %857 = vmatprep.subr.mxu0 0.0
        %858 = vmatpush1.xpose.msra.mxu0 0.0
        %859 = vmatprep.subr.mxu0 0.0
        %860 = vmatpush1.xpose.msra.mxu0 0.0
        %861 = vmatprep.subr.mxu0 0.0
        %862 = vmatpush1.xpose.msra.mxu0 0.0
        %863 = vmatprep.subr.mxu0 0.0
        %864 = vmatpush1.xpose.msra.mxu0 0.0
        %865 = vmatprep.subr.mxu0 0.0
        %866 = vmatpush1.xpose.msra.mxu0 0.0
        %867 = vmatprep.subr.mxu0 0.0
        %868 = vmatpush1.xpose.msra.mxu0 0.0
        %869 = vmatprep.subr.mxu0 0.0
        %870 = vmatpush1.xpose.msra.mxu0 0.0
        %871 = vmatprep.subr.mxu0 0.0
        %872 = vmatpush1.xpose.msra.mxu0 0.0
        %873 = vmatprep.subr.mxu0 0.0
        %874 = vmatpush1.xpose.msra.mxu0 0.0
        %875 = vmatprep.subr.mxu0 0.0
        %876 = vmatpush1.xpose.msra.mxu0 0.0
        %877 = vmatprep.subr.mxu0 0.0
        %878 = vmatpush1.xpose.msra.mxu0 0.0
        %879 = vmatprep.subr.mxu0 0.0
        %880 = vmatpush1.xpose.msra.mxu0 %v849
        %881 = vmatprep.subr.mxu0 0.0
        %882 = vmatpush1.xpose.msra.mxu0 %v846
        %883 = vmatprep.subr.mxu0 0.0
        %884 = vmatpush2.xpose.msra.mxu0 0.0
        %885 = vmatprep.subr.mxu0 0.0
        %886 = vmatpush2.xpose.msra.mxu0 0.0
        %887 = vmatprep.subr.mxu0 0.0
        %888 = vmatpush2.xpose.msra.mxu0 0.0
        %889 = vmatprep.subr.mxu0 0.0
        %890 = vmatpush2.xpose.msra.mxu0 0.0
        %891 = vmatprep.subr.mxu0 0.0
        %892 = vmatpush2.xpose.msra.mxu0 0.0
        %893 = vmatprep.subr.mxu0 0.0
        %894 = vmatpush2.xpose.msra.mxu0 0.0
        %895 = vmatprep.subr.mxu0 0.0
        %896 = vmatpush2.xpose.msra.mxu0 0.0
        %897 = vmatprep.subr.mxu0 0.0
        %898 = vmatpush2.xpose.msra.mxu0 0.0
        %899 = vmatprep.subr.mxu0 0.0
        %900 = vmatpush2.xpose.msra.mxu0 0.0
        %901 = vmatprep.subr.mxu0 0.0
        %902 = vmatpush2.xpose.msra.mxu0 0.0
        %903 = vmatprep.subr.mxu0 0.0
        %904 = vmatpush2.xpose.msra.mxu0 0.0
        %905 = vmatprep.subr.mxu0 0.0
        %906 = vmatpush2.xpose.msra.mxu0 0.0
        %907 = vmatprep.subr.mxu0 0.0
        %908 = vmatpush2.xpose.msra.mxu0 0.0
        %909 = vmatprep.subr.mxu0 0.0
        %910 = vmatpush2.xpose.msra.mxu0 0.0
        %911 = vmatprep.subr.mxu0 0.0
        %912 = vmatpush2.xpose.msra.mxu0 0.0
        %913 = vmatprep.subr.mxu0 0.0
        %914 = vmatpush2.xpose.msra.mxu0 0.0
        %915 = vmatprep.mubr.f32.mxu0 0.0
        %916 = vmatmul.mubr.f32.gmra.mxu0 %v843
        %v917 = vpop.f32.mrf.mxu0
        %v918 = vadd.f32 0.0, %v917
        %v919 = vpop.f32.mrf.mxu0
        %920 = vdwg.mxu0
        %v921 = vsel %vm452, %v449, 0
        %v924 = vsel %vm452, %v397, 0
        %v927 = vsel %vm452, %v398, 0
        %929 = vmatprep.subr.mxu0 0.0
        %930 = vmatpush1.xpose.msra.mxu0 0.0
        %931 = vmatprep.subr.mxu0 0.0
        %932 = vmatpush1.xpose.msra.mxu0 0.0
        %933 = vmatprep.subr.mxu0 0.0
        %934 = vmatpush1.xpose.msra.mxu0 0.0
        %935 = vmatprep.subr.mxu0 0.0
        %936 = vmatpush1.xpose.msra.mxu0 0.0
        %937 = vmatprep.subr.mxu0 0.0
        %938 = vmatpush1.xpose.msra.mxu0 0.0
        %939 = vmatprep.subr.mxu0 0.0
        %940 = vmatpush1.xpose.msra.mxu0 0.0
        %941 = vmatprep.subr.mxu0 0.0
        %942 = vmatpush1.xpose.msra.mxu0 0.0
        %943 = vmatprep.subr.mxu0 0.0
        %944 = vmatpush1.xpose.msra.mxu0 0.0
        %945 = vmatprep.subr.mxu0 0.0
        %946 = vmatpush1.xpose.msra.mxu0 0.0
        %947 = vmatprep.subr.mxu0 0.0
        %948 = vmatpush1.xpose.msra.mxu0 0.0
        %949 = vmatprep.subr.mxu0 0.0
        %950 = vmatpush1.xpose.msra.mxu0 0.0
        %951 = vmatprep.subr.mxu0 0.0
        %952 = vmatpush1.xpose.msra.mxu0 0.0
        %953 = vmatprep.subr.mxu0 0.0
        %954 = vmatpush1.xpose.msra.mxu0 0.0
        %955 = vmatprep.subr.mxu0 0.0
        %956 = vmatpush1.xpose.msra.mxu0 0.0
        %957 = vmatprep.subr.mxu0 0.0
        %958 = vmatpush1.xpose.msra.mxu0 %v927
        %959 = vmatprep.subr.mxu0 0.0
        %960 = vmatpush1.xpose.msra.mxu0 %v924
        %961 = vmatprep.subr.mxu0 0.0
        %962 = vmatpush2.xpose.msra.mxu0 0.0
        %963 = vmatprep.subr.mxu0 0.0
        %964 = vmatpush2.xpose.msra.mxu0 0.0
        %965 = vmatprep.subr.mxu0 0.0
        %966 = vmatpush2.xpose.msra.mxu0 0.0
        %967 = vmatprep.subr.mxu0 0.0
        %968 = vmatpush2.xpose.msra.mxu0 0.0
        %969 = vmatprep.subr.mxu0 0.0
        %970 = vmatpush2.xpose.msra.mxu0 0.0
        %971 = vmatprep.subr.mxu0 0.0
        %972 = vmatpush2.xpose.msra.mxu0 0.0
        %973 = vmatprep.subr.mxu0 0.0
        %974 = vmatpush2.xpose.msra.mxu0 0.0
        %975 = vmatprep.subr.mxu0 0.0
        %976 = vmatpush2.xpose.msra.mxu0 0.0
        %977 = vmatprep.subr.mxu0 0.0
        %978 = vmatpush2.xpose.msra.mxu0 0.0
        %979 = vmatprep.subr.mxu0 0.0
        %980 = vmatpush2.xpose.msra.mxu0 0.0
        %981 = vmatprep.subr.mxu0 0.0
        %982 = vmatpush2.xpose.msra.mxu0 0.0
        %983 = vmatprep.subr.mxu0 0.0
        %984 = vmatpush2.xpose.msra.mxu0 0.0
        %985 = vmatprep.subr.mxu0 0.0
        %986 = vmatpush2.xpose.msra.mxu0 0.0
        %987 = vmatprep.subr.mxu0 0.0
        %988 = vmatpush2.xpose.msra.mxu0 0.0
        %989 = vmatprep.subr.mxu0 0.0
        %990 = vmatpush2.xpose.msra.mxu0 0.0
        %991 = vmatprep.subr.mxu0 0.0
        %992 = vmatpush2.xpose.msra.mxu0 0.0
        %993 = vmatprep.mubr.f32.mxu0 0.0
        %994 = vmatmul.mubr.f32.gmra.mxu0 %v921
        %v995 = vpop.f32.mrf.mxu0
        %v996 = vadd.f32 0.0, %v995
        %v997 = vpop.f32.mrf.mxu0
        %998 = vdwg.mxu0
        %v999 = vsel %vm452, %v451, 0
        %v1002 = vsel %vm452, %v399, 0
        %v1005 = vsel %vm452, %v400, 0
        %1007 = vmatprep.subr.mxu0 0.0
        %1008 = vmatpush1.xpose.msra.mxu0 0.0
        %1009 = vmatprep.subr.mxu0 0.0
        %1010 = vmatpush1.xpose.msra.mxu0 0.0
        %1011 = vmatprep.subr.mxu0 0.0
        %1012 = vmatpush1.xpose.msra.mxu0 0.0
        %1013 = vmatprep.subr.mxu0 0.0
        %1014 = vmatpush1.xpose.msra.mxu0 0.0
        %1015 = vmatprep.subr.mxu0 0.0
        %1016 = vmatpush1.xpose.msra.mxu0 0.0
        %1017 = vmatprep.subr.mxu0 0.0
        %1018 = vmatpush1.xpose.msra.mxu0 0.0
        %1019 = vmatprep.subr.mxu0 0.0
        %1020 = vmatpush1.xpose.msra.mxu0 0.0
        %1021 = vmatprep.subr.mxu0 0.0
        %1022 = vmatpush1.xpose.msra.mxu0 0.0
        %1023 = vmatprep.subr.mxu0 0.0
        %1024 = vmatpush1.xpose.msra.mxu0 0.0
        %1025 = vmatprep.subr.mxu0 0.0
        %1026 = vmatpush1.xpose.msra.mxu0 0.0
        %1027 = vmatprep.subr.mxu0 0.0
        %1028 = vmatpush1.xpose.msra.mxu0 0.0
        %1029 = vmatprep.subr.mxu0 0.0
        %1030 = vmatpush1.xpose.msra.mxu0 0.0
        %1031 = vmatprep.subr.mxu0 0.0
        %1032 = vmatpush1.xpose.msra.mxu0 0.0
        %1033 = vmatprep.subr.mxu0 0.0
        %1034 = vmatpush1.xpose.msra.mxu0 0.0
        %1035 = vmatprep.subr.mxu0 0.0
        %1036 = vmatpush1.xpose.msra.mxu0 %v1005
        %1037 = vmatprep.subr.mxu0 0.0
        %1038 = vmatpush1.xpose.msra.mxu0 %v1002
        %1039 = vmatprep.subr.mxu0 0.0
        %1040 = vmatpush2.xpose.msra.mxu0 0.0
        %1041 = vmatprep.subr.mxu0 0.0
        %1042 = vmatpush2.xpose.msra.mxu0 0.0
        %1043 = vmatprep.subr.mxu0 0.0
        %1044 = vmatpush2.xpose.msra.mxu0 0.0
        %1045 = vmatprep.subr.mxu0 0.0
        %1046 = vmatpush2.xpose.msra.mxu0 0.0
        %1047 = vmatprep.subr.mxu0 0.0
        %1048 = vmatpush2.xpose.msra.mxu0 0.0
        %1049 = vmatprep.subr.mxu0 0.0
        %1050 = vmatpush2.xpose.msra.mxu0 0.0
        %1051 = vmatprep.subr.mxu0 0.0
        %1052 = vmatpush2.xpose.msra.mxu0 0.0
        %1053 = vmatprep.subr.mxu0 0.0
        %1054 = vmatpush2.xpose.msra.mxu0 0.0
        %1055 = vmatprep.subr.mxu0 0.0
        %1056 = vmatpush2.xpose.msra.mxu0 0.0
        %1057 = vmatprep.subr.mxu0 0.0
        %1058 = vmatpush2.xpose.msra.mxu0 0.0
        %1059 = vmatprep.subr.mxu0 0.0
        %1060 = vmatpush2.xpose.msra.mxu0 0.0
        %1061 = vmatprep.subr.mxu0 0.0
        %1062 = vmatpush2.xpose.msra.mxu0 0.0
        %1063 = vmatprep.subr.mxu0 0.0
        %1064 = vmatpush2.xpose.msra.mxu0 0.0
        %1065 = vmatprep.subr.mxu0 0.0
        %1066 = vmatpush2.xpose.msra.mxu0 0.0
        %1067 = vmatprep.subr.mxu0 0.0
        %1068 = vmatpush2.xpose.msra.mxu0 0.0
        %1069 = vmatprep.subr.mxu0 0.0
        %1070 = vmatpush2.xpose.msra.mxu0 0.0
        %1071 = vmatprep.mubr.f32.mxu0 0.0
        %1072 = vmatmul.mubr.f32.gmra.mxu0 %v999
        %v1073 = vpop.f32.mrf.mxu0
        %v1074 = vadd.f32 0.0, %v1073
        %v1075 = vpop.f32.mrf.mxu0
        %1076 = vdwg.mxu0
        %v1077 = vld [vmem:[#allocation3] sm:$0xff]
        %v1086 = vrot.slane %v606, 7
        %vm1087 = vcmask 1041409
        %v1088 = vsel %vm1087, %v1086, %v528
        %v1089 = vrot.slane %v684, 6
        %vm1090 = vcmask 1042434
        %v1091 = vsel %vm1090, %v1089, %v1088
        %v1092 = vrot.slane %v762, 5
        %vm1093 = vcmask 1043459
        %v1094 = vsel %vm1093, %v1092, %v1091
        %v1095 = vrot.slane %v840, 4
        %vm1096 = vcmask 1044484
        %v1097 = vsel %vm1096, %v1095, %v1094
        %v1098 = vrot.slane %v918, 3
        %vm1099 = vcmask 1045509
        %v1100 = vsel %vm1099, %v1098, %v1097
        %v1101 = vrot.slane %v996, 2
        %vm1102 = vcmask 1046534
        %v1103 = vsel %vm1102, %v1101, %v1100
        %v1104 = vrot.slane %v1074, 1
        %vm1105 = vcmask 1047559
        %v1106 = vsel %vm1105, %v1104, %v1103
        %vm1108 = vcmask 130048
        %v1109 = vsel %vm1108, %v1106, -inf
        %1110 = vmax.xlane.f32.xlu0 %v1109
        %v1111 = vpop.xlane.xlu0 %1110
        %v1112 = vmax.f32 %v1077, %v1111
        %v1113 = vsub.f32 %v1077, %v1112
        %v1114 = vmul.f32 %v1113, 1.442695
        %v1115 = vpow.pop %v1114
        %1117 = vset.pattern.permute.xlu0 0
        %1118 = vperm.xlu0 %1117, %v1112
        %v1119 = vpop.permute.xlu0 %1118
        %v1120 = vrot.slane %v1119, 1
        %v1121 = vrot.slane %v1119, 2
        %v1122 = vrot.slane %v1119, 3
        %v1123 = vrot.slane %v1119, 4
        %v1124 = vrot.slane %v1119, 5
        %v1125 = vrot.slane %v1119, 6
        %v1126 = vrot.slane %v1119, 7
        %v1135 = vsub.f32 %v528, %v1119
        %v1136 = vsub.f32 %v606, %v1120
        %v1137 = vsub.f32 %v684, %v1121
        %v1138 = vsub.f32 %v762, %v1122
        %v1139 = vsub.f32 %v840, %v1123
        %v1140 = vsub.f32 %v918, %v1124
        %v1141 = vsub.f32 %v996, %v1125
        %v1142 = vsub.f32 %v1074, %v1126
        %v1143 = vmul.f32 %v1135, 1.442695
        %v1144 = vpow.pop %v1143
        %v1145 = vmul.f32 %v1136, 1.442695
        %v1146 = vpow.pop %v1145
        %v1147 = vmul.f32 %v1137, 1.442695
        %v1148 = vpow.pop %v1147
        %v1149 = vmul.f32 %v1138, 1.442695
        %v1150 = vpow.pop %v1149
        %v1151 = vmul.f32 %v1139, 1.442695
        %v1152 = vpow.pop %v1151
        %v1153 = vmul.f32 %v1140, 1.442695
        %v1154 = vpow.pop %v1153
        %v1155 = vmul.f32 %v1141, 1.442695
        %v1156 = vpow.pop %v1155
        %v1157 = vmul.f32 %v1142, 1.442695
        %v1158 = vpow.pop %v1157
        %v1159 = vld [vmem:[#allocation4] sm:$0xff]
        %v1160 = vmul.f32 %v1115, %v1159
        %v1169 = vrot.slane %v1146, 7
        %v1170 = vsel %vm1087, %v1169, %v1144
        %v1171 = vrot.slane %v1148, 6
        %v1172 = vsel %vm1090, %v1171, %v1170
        %v1173 = vrot.slane %v1150, 5
        %v1174 = vsel %vm1093, %v1173, %v1172
        %v1175 = vrot.slane %v1152, 4
        %v1176 = vsel %vm1096, %v1175, %v1174
        %v1177 = vrot.slane %v1154, 3
        %v1178 = vsel %vm1099, %v1177, %v1176
        %v1179 = vrot.slane %v1156, 2
        %v1180 = vsel %vm1102, %v1179, %v1178
        %v1181 = vrot.slane %v1158, 1
        %v1182 = vsel %vm1105, %v1181, %v1180
        %v1184 = vsel %vm1108, %v1182, 0.0
        %1185 = vadd.xlane.f32.xlu0 %v1184
        %v1186 = vpop.xlane.xlu0 %1185
        %v1187 = vadd.f32 %v1160, %v1186
        %vm1188 = vcmask 7168
        %1189 = vst.msk [vmem:[#allocation4] sm:$0xff] %vm1188, %v1187
        %v1190 = vsel %vm1108, %v1144, 0
        %1192 = vmatprep.subr.mxu0 0.0
        %1193 = vmatpush1.msra.mxu0 0.0
        %1194 = vmatprep.subr.mxu0 0.0
        %1195 = vmatpush1.msra.mxu0 0.0
        %1196 = vmatprep.subr.mxu0 0.0
        %1197 = vmatpush1.msra.mxu0 0.0
        %1198 = vmatprep.subr.mxu0 0.0
        %1199 = vmatpush1.msra.mxu0 0.0
        %1200 = vmatprep.subr.mxu0 0.0
        %1201 = vmatpush1.msra.mxu0 0.0
        %1202 = vmatprep.subr.mxu0 0.0
        %1203 = vmatpush1.msra.mxu0 0.0
        %1204 = vmatprep.subr.mxu0 0.0
        %1205 = vmatpush1.msra.mxu0 0.0
        %1206 = vmatprep.subr.mxu0 0.0
        %1207 = vmatpush1.msra.mxu0 0.0
        %1208 = vmatprep.subr.mxu0 0.0
        %1209 = vmatpush1.msra.mxu0 0.0
        %1210 = vmatprep.subr.mxu0 0.0
        %1211 = vmatpush1.msra.mxu0 0.0
        %1212 = vmatprep.subr.mxu0 0.0
        %1213 = vmatpush1.msra.mxu0 0.0
        %1214 = vmatprep.subr.mxu0 0.0
        %1215 = vmatpush1.msra.mxu0 0.0
        %1216 = vmatprep.subr.mxu0 0.0
        %1217 = vmatpush1.msra.mxu0 0.0
        %1218 = vmatprep.subr.mxu0 0.0
        %1219 = vmatpush1.msra.mxu0 0.0
        %1220 = vmatprep.subr.mxu0 0.0
        %1221 = vmatpush1.msra.mxu0 %v386
        %1222 = vmatprep.subr.mxu0 0.0
        %1223 = vmatpush1.msra.mxu0 %v385
        %1224 = vmatprep.subr.mxu0 0.0
        %1225 = vmatpush2.msra.mxu0 0.0
        %1226 = vmatprep.subr.mxu0 0.0
        %1227 = vmatpush2.msra.mxu0 0.0
        %1228 = vmatprep.subr.mxu0 0.0
        %1229 = vmatpush2.msra.mxu0 0.0
        %1230 = vmatprep.subr.mxu0 0.0
        %1231 = vmatpush2.msra.mxu0 0.0
        %1232 = vmatprep.subr.mxu0 0.0
        %1233 = vmatpush2.msra.mxu0 0.0
        %1234 = vmatprep.subr.mxu0 0.0
        %1235 = vmatpush2.msra.mxu0 0.0
        %1236 = vmatprep.subr.mxu0 0.0
        %1237 = vmatpush2.msra.mxu0 0.0
        %1238 = vmatprep.subr.mxu0 0.0
        %1239 = vmatpush2.msra.mxu0 0.0
        %1240 = vmatprep.subr.mxu0 0.0
        %1241 = vmatpush2.msra.mxu0 0.0
        %1242 = vmatprep.subr.mxu0 0.0
        %1243 = vmatpush2.msra.mxu0 0.0
        %1244 = vmatprep.subr.mxu0 0.0
        %1245 = vmatpush2.msra.mxu0 0.0
        %1246 = vmatprep.subr.mxu0 0.0
        %1247 = vmatpush2.msra.mxu0 0.0
        %1248 = vmatprep.subr.mxu0 0.0
        %1249 = vmatpush2.msra.mxu0 0.0
        %1250 = vmatprep.subr.mxu0 0.0
        %1251 = vmatpush2.msra.mxu0 0.0
        %1252 = vmatprep.subr.mxu0 0.0
        %1253 = vmatpush2.msra.mxu0 0.0
        %1254 = vmatprep.subr.mxu0 0.0
        %1255 = vmatpush2.msra.mxu0 0.0
        %1256 = vmatprep.mubr.f32.mxu0 0.0
        %1257 = vmatmul.mubr.f32.gmra.mxu0 %v1190
        %v1258 = vpop.f32.mrf.mxu0
        %v1259 = vadd.f32 0.0, %v1258
        %v1260 = vpop.f32.mrf.mxu0
        %1261 = vdwg.mxu0
        %v1262 = vsel %vm1108, %v1146, 0
        %1264 = vmatprep.subr.mxu0 0.0
        %1265 = vmatpush1.msra.mxu0 0.0
        %1266 = vmatprep.subr.mxu0 0.0
        %1267 = vmatpush1.msra.mxu0 0.0
        %1268 = vmatprep.subr.mxu0 0.0
        %1269 = vmatpush1.msra.mxu0 0.0
        %1270 = vmatprep.subr.mxu0 0.0
        %1271 = vmatpush1.msra.mxu0 0.0
        %1272 = vmatprep.subr.mxu0 0.0
        %1273 = vmatpush1.msra.mxu0 0.0
        %1274 = vmatprep.subr.mxu0 0.0
        %1275 = vmatpush1.msra.mxu0 0.0
        %1276 = vmatprep.subr.mxu0 0.0
        %1277 = vmatpush1.msra.mxu0 0.0
        %1278 = vmatprep.subr.mxu0 0.0
        %1279 = vmatpush1.msra.mxu0 0.0
        %1280 = vmatprep.subr.mxu0 0.0
        %1281 = vmatpush1.msra.mxu0 0.0
        %1282 = vmatprep.subr.mxu0 0.0
        %1283 = vmatpush1.msra.mxu0 0.0
        %1284 = vmatprep.subr.mxu0 0.0
        %1285 = vmatpush1.msra.mxu0 0.0
        %1286 = vmatprep.subr.mxu0 0.0
        %1287 = vmatpush1.msra.mxu0 0.0
        %1288 = vmatprep.subr.mxu0 0.0
        %1289 = vmatpush1.msra.mxu0 0.0
        %1290 = vmatprep.subr.mxu0 0.0
        %1291 = vmatpush1.msra.mxu0 0.0
        %1292 = vmatprep.subr.mxu0 0.0
        %1293 = vmatpush1.msra.mxu0 %v388
        %1294 = vmatprep.subr.mxu0 0.0
        %1295 = vmatpush1.msra.mxu0 %v387
        %1296 = vmatprep.subr.mxu0 0.0
        %1297 = vmatpush2.msra.mxu0 0.0
        %1298 = vmatprep.subr.mxu0 0.0
        %1299 = vmatpush2.msra.mxu0 0.0
        %1300 = vmatprep.subr.mxu0 0.0
        %1301 = vmatpush2.msra.mxu0 0.0
        %1302 = vmatprep.subr.mxu0 0.0
        %1303 = vmatpush2.msra.mxu0 0.0
        %1304 = vmatprep.subr.mxu0 0.0
        %1305 = vmatpush2.msra.mxu0 0.0
        %1306 = vmatprep.subr.mxu0 0.0
        %1307 = vmatpush2.msra.mxu0 0.0
        %1308 = vmatprep.subr.mxu0 0.0
        %1309 = vmatpush2.msra.mxu0 0.0
        %1310 = vmatprep.subr.mxu0 0.0
        %1311 = vmatpush2.msra.mxu0 0.0
        %1312 = vmatprep.subr.mxu0 0.0
        %1313 = vmatpush2.msra.mxu0 0.0
        %1314 = vmatprep.subr.mxu0 0.0
        %1315 = vmatpush2.msra.mxu0 0.0
        %1316 = vmatprep.subr.mxu0 0.0
        %1317 = vmatpush2.msra.mxu0 0.0
        %1318 = vmatprep.subr.mxu0 0.0
        %1319 = vmatpush2.msra.mxu0 0.0
        %1320 = vmatprep.subr.mxu0 0.0
        %1321 = vmatpush2.msra.mxu0 0.0
        %1322 = vmatprep.subr.mxu0 0.0
        %1323 = vmatpush2.msra.mxu0 0.0
        %1324 = vmatprep.subr.mxu0 0.0
        %1325 = vmatpush2.msra.mxu0 0.0
        %1326 = vmatprep.subr.mxu0 0.0
        %1327 = vmatpush2.msra.mxu0 0.0
        %1328 = vmatprep.mubr.f32.mxu0 0.0
        %1329 = vmatmul.mubr.f32.gmra.mxu0 %v1262
        %v1330 = vpop.f32.mrf.mxu0
        %v1331 = vadd.f32 0.0, %v1330
        %v1332 = vpop.f32.mrf.mxu0
        %1333 = vdwg.mxu0
        %v1334 = vsel %vm1108, %v1148, 0
        %1336 = vmatprep.subr.mxu0 0.0
        %1337 = vmatpush1.msra.mxu0 0.0
        %1338 = vmatprep.subr.mxu0 0.0
        %1339 = vmatpush1.msra.mxu0 0.0
        %1340 = vmatprep.subr.mxu0 0.0
        %1341 = vmatpush1.msra.mxu0 0.0
        %1342 = vmatprep.subr.mxu0 0.0
        %1343 = vmatpush1.msra.mxu0 0.0
        %1344 = vmatprep.subr.mxu0 0.0
        %1345 = vmatpush1.msra.mxu0 0.0
        %1346 = vmatprep.subr.mxu0 0.0
        %1347 = vmatpush1.msra.mxu0 0.0
        %1348 = vmatprep.subr.mxu0 0.0
        %1349 = vmatpush1.msra.mxu0 0.0
        %1350 = vmatprep.subr.mxu0 0.0
        %1351 = vmatpush1.msra.mxu0 0.0
        %1352 = vmatprep.subr.mxu0 0.0
        %1353 = vmatpush1.msra.mxu0 0.0
        %1354 = vmatprep.subr.mxu0 0.0
        %1355 = vmatpush1.msra.mxu0 0.0
        %1356 = vmatprep.subr.mxu0 0.0
        %1357 = vmatpush1.msra.mxu0 0.0
        %1358 = vmatprep.subr.mxu0 0.0
        %1359 = vmatpush1.msra.mxu0 0.0
        %1360 = vmatprep.subr.mxu0 0.0
        %1361 = vmatpush1.msra.mxu0 0.0
        %1362 = vmatprep.subr.mxu0 0.0
        %1363 = vmatpush1.msra.mxu0 0.0
        %1364 = vmatprep.subr.mxu0 0.0
        %1365 = vmatpush1.msra.mxu0 %v390
        %1366 = vmatprep.subr.mxu0 0.0
        %1367 = vmatpush1.msra.mxu0 %v389
        %1368 = vmatprep.subr.mxu0 0.0
        %1369 = vmatpush2.msra.mxu0 0.0
        %1370 = vmatprep.subr.mxu0 0.0
        %1371 = vmatpush2.msra.mxu0 0.0
        %1372 = vmatprep.subr.mxu0 0.0
        %1373 = vmatpush2.msra.mxu0 0.0
        %1374 = vmatprep.subr.mxu0 0.0
        %1375 = vmatpush2.msra.mxu0 0.0
        %1376 = vmatprep.subr.mxu0 0.0
        %1377 = vmatpush2.msra.mxu0 0.0
        %1378 = vmatprep.subr.mxu0 0.0
        %1379 = vmatpush2.msra.mxu0 0.0
        %1380 = vmatprep.subr.mxu0 0.0
        %1381 = vmatpush2.msra.mxu0 0.0
        %1382 = vmatprep.subr.mxu0 0.0
        %1383 = vmatpush2.msra.mxu0 0.0
        %1384 = vmatprep.subr.mxu0 0.0
        %1385 = vmatpush2.msra.mxu0 0.0
        %1386 = vmatprep.subr.mxu0 0.0
        %1387 = vmatpush2.msra.mxu0 0.0
        %1388 = vmatprep.subr.mxu0 0.0
        %1389 = vmatpush2.msra.mxu0 0.0
        %1390 = vmatprep.subr.mxu0 0.0
        %1391 = vmatpush2.msra.mxu0 0.0
        %1392 = vmatprep.subr.mxu0 0.0
        %1393 = vmatpush2.msra.mxu0 0.0
        %1394 = vmatprep.subr.mxu0 0.0
        %1395 = vmatpush2.msra.mxu0 0.0
        %1396 = vmatprep.subr.mxu0 0.0
        %1397 = vmatpush2.msra.mxu0 0.0
        %1398 = vmatprep.subr.mxu0 0.0
        %1399 = vmatpush2.msra.mxu0 0.0
        %1400 = vmatprep.mubr.f32.mxu0 0.0
        %1401 = vmatmul.mubr.f32.gmra.mxu0 %v1334
        %v1402 = vpop.f32.mrf.mxu0
        %v1403 = vadd.f32 0.0, %v1402
        %v1404 = vpop.f32.mrf.mxu0
        %1405 = vdwg.mxu0
        %v1406 = vsel %vm1108, %v1150, 0
        %1408 = vmatprep.subr.mxu0 0.0
        %1409 = vmatpush1.msra.mxu0 0.0
        %1410 = vmatprep.subr.mxu0 0.0
        %1411 = vmatpush1.msra.mxu0 0.0
        %1412 = vmatprep.subr.mxu0 0.0
        %1413 = vmatpush1.msra.mxu0 0.0
        %1414 = vmatprep.subr.mxu0 0.0
        %1415 = vmatpush1.msra.mxu0 0.0
        %1416 = vmatprep.subr.mxu0 0.0
        %1417 = vmatpush1.msra.mxu0 0.0
        %1418 = vmatprep.subr.mxu0 0.0
        %1419 = vmatpush1.msra.mxu0 0.0
        %1420 = vmatprep.subr.mxu0 0.0
        %1421 = vmatpush1.msra.mxu0 0.0
        %1422 = vmatprep.subr.mxu0 0.0
        %1423 = vmatpush1.msra.mxu0 0.0
        %1424 = vmatprep.subr.mxu0 0.0
        %1425 = vmatpush1.msra.mxu0 0.0
        %1426 = vmatprep.subr.mxu0 0.0
        %1427 = vmatpush1.msra.mxu0 0.0
        %1428 = vmatprep.subr.mxu0 0.0
        %1429 = vmatpush1.msra.mxu0 0.0
        %1430 = vmatprep.subr.mxu0 0.0
        %1431 = vmatpush1.msra.mxu0 0.0
        %1432 = vmatprep.subr.mxu0 0.0
        %1433 = vmatpush1.msra.mxu0 0.0
        %1434 = vmatprep.subr.mxu0 0.0
        %1435 = vmatpush1.msra.mxu0 0.0
        %1436 = vmatprep.subr.mxu0 0.0
        %1437 = vmatpush1.msra.mxu0 %v392
        %1438 = vmatprep.subr.mxu0 0.0
        %1439 = vmatpush1.msra.mxu0 %v391
        %1440 = vmatprep.subr.mxu0 0.0
        %1441 = vmatpush2.msra.mxu0 0.0
        %1442 = vmatprep.subr.mxu0 0.0
        %1443 = vmatpush2.msra.mxu0 0.0
        %1444 = vmatprep.subr.mxu0 0.0
        %1445 = vmatpush2.msra.mxu0 0.0
        %1446 = vmatprep.subr.mxu0 0.0
        %1447 = vmatpush2.msra.mxu0 0.0
        %1448 = vmatprep.subr.mxu0 0.0
        %1449 = vmatpush2.msra.mxu0 0.0
        %1450 = vmatprep.subr.mxu0 0.0
        %1451 = vmatpush2.msra.mxu0 0.0
        %1452 = vmatprep.subr.mxu0 0.0
        %1453 = vmatpush2.msra.mxu0 0.0
        %1454 = vmatprep.subr.mxu0 0.0
        %1455 = vmatpush2.msra.mxu0 0.0
        %1456 = vmatprep.subr.mxu0 0.0
        %1457 = vmatpush2.msra.mxu0 0.0
        %1458 = vmatprep.subr.mxu0 0.0
        %1459 = vmatpush2.msra.mxu0 0.0
        %1460 = vmatprep.subr.mxu0 0.0
        %1461 = vmatpush2.msra.mxu0 0.0
        %1462 = vmatprep.subr.mxu0 0.0
        %1463 = vmatpush2.msra.mxu0 0.0
        %1464 = vmatprep.subr.mxu0 0.0
        %1465 = vmatpush2.msra.mxu0 0.0
        %1466 = vmatprep.subr.mxu0 0.0
        %1467 = vmatpush2.msra.mxu0 0.0
        %1468 = vmatprep.subr.mxu0 0.0
        %1469 = vmatpush2.msra.mxu0 0.0
        %1470 = vmatprep.subr.mxu0 0.0
        %1471 = vmatpush2.msra.mxu0 0.0
        %1472 = vmatprep.mubr.f32.mxu0 0.0
        %1473 = vmatmul.mubr.f32.gmra.mxu0 %v1406
        %v1474 = vpop.f32.mrf.mxu0
        %v1475 = vadd.f32 0.0, %v1474
        %v1476 = vpop.f32.mrf.mxu0
        %1477 = vdwg.mxu0
        %v1478 = vsel %vm1108, %v1152, 0
        %1480 = vmatprep.subr.mxu0 0.0
        %1481 = vmatpush1.msra.mxu0 0.0
        %1482 = vmatprep.subr.mxu0 0.0
        %1483 = vmatpush1.msra.mxu0 0.0
        %1484 = vmatprep.subr.mxu0 0.0
        %1485 = vmatpush1.msra.mxu0 0.0
        %1486 = vmatprep.subr.mxu0 0.0
        %1487 = vmatpush1.msra.mxu0 0.0
        %1488 = vmatprep.subr.mxu0 0.0
        %1489 = vmatpush1.msra.mxu0 0.0
        %1490 = vmatprep.subr.mxu0 0.0
        %1491 = vmatpush1.msra.mxu0 0.0
        %1492 = vmatprep.subr.mxu0 0.0
        %1493 = vmatpush1.msra.mxu0 0.0
        %1494 = vmatprep.subr.mxu0 0.0
        %1495 = vmatpush1.msra.mxu0 0.0
        %1496 = vmatprep.subr.mxu0 0.0
        %1497 = vmatpush1.msra.mxu0 0.0
        %1498 = vmatprep.subr.mxu0 0.0
        %1499 = vmatpush1.msra.mxu0 0.0
        %1500 = vmatprep.subr.mxu0 0.0
        %1501 = vmatpush1.msra.mxu0 0.0
        %1502 = vmatprep.subr.mxu0 0.0
        %1503 = vmatpush1.msra.mxu0 0.0
        %1504 = vmatprep.subr.mxu0 0.0
        %1505 = vmatpush1.msra.mxu0 0.0
        %1506 = vmatprep.subr.mxu0 0.0
        %1507 = vmatpush1.msra.mxu0 0.0
        %1508 = vmatprep.subr.mxu0 0.0
        %1509 = vmatpush1.msra.mxu0 %v394
        %1510 = vmatprep.subr.mxu0 0.0
        %1511 = vmatpush1.msra.mxu0 %v393
        %1512 = vmatprep.subr.mxu0 0.0
        %1513 = vmatpush2.msra.mxu0 0.0
        %1514 = vmatprep.subr.mxu0 0.0
        %1515 = vmatpush2.msra.mxu0 0.0
        %1516 = vmatprep.subr.mxu0 0.0
        %1517 = vmatpush2.msra.mxu0 0.0
        %1518 = vmatprep.subr.mxu0 0.0
        %1519 = vmatpush2.msra.mxu0 0.0
        %1520 = vmatprep.subr.mxu0 0.0
        %1521 = vmatpush2.msra.mxu0 0.0
        %1522 = vmatprep.subr.mxu0 0.0
        %1523 = vmatpush2.msra.mxu0 0.0
        %1524 = vmatprep.subr.mxu0 0.0
        %1525 = vmatpush2.msra.mxu0 0.0
        %1526 = vmatprep.subr.mxu0 0.0
        %1527 = vmatpush2.msra.mxu0 0.0
        %1528 = vmatprep.subr.mxu0 0.0
        %1529 = vmatpush2.msra.mxu0 0.0
        %1530 = vmatprep.subr.mxu0 0.0
        %1531 = vmatpush2.msra.mxu0 0.0
        %1532 = vmatprep.subr.mxu0 0.0
        %1533 = vmatpush2.msra.mxu0 0.0
        %1534 = vmatprep.subr.mxu0 0.0
        %1535 = vmatpush2.msra.mxu0 0.0
        %1536 = vmatprep.subr.mxu0 0.0
        %1537 = vmatpush2.msra.mxu0 0.0
        %1538 = vmatprep.subr.mxu0 0.0
        %1539 = vmatpush2.msra.mxu0 0.0
        %1540 = vmatprep.subr.mxu0 0.0
        %1541 = vmatpush2.msra.mxu0 0.0
        %1542 = vmatprep.subr.mxu0 0.0
        %1543 = vmatpush2.msra.mxu0 0.0
        %1544 = vmatprep.mubr.f32.mxu0 0.0
        %1545 = vmatmul.mubr.f32.gmra.mxu0 %v1478
        %v1546 = vpop.f32.mrf.mxu0
        %v1547 = vadd.f32 0.0, %v1546
        %v1548 = vpop.f32.mrf.mxu0
        %1549 = vdwg.mxu0
        %v1550 = vsel %vm1108, %v1154, 0
        %1552 = vmatprep.subr.mxu0 0.0
        %1553 = vmatpush1.msra.mxu0 0.0
        %1554 = vmatprep.subr.mxu0 0.0
        %1555 = vmatpush1.msra.mxu0 0.0
        %1556 = vmatprep.subr.mxu0 0.0
        %1557 = vmatpush1.msra.mxu0 0.0
        %1558 = vmatprep.subr.mxu0 0.0
        %1559 = vmatpush1.msra.mxu0 0.0
        %1560 = vmatprep.subr.mxu0 0.0
        %1561 = vmatpush1.msra.mxu0 0.0
        %1562 = vmatprep.subr.mxu0 0.0
        %1563 = vmatpush1.msra.mxu0 0.0
        %1564 = vmatprep.subr.mxu0 0.0
        %1565 = vmatpush1.msra.mxu0 0.0
        %1566 = vmatprep.subr.mxu0 0.0
        %1567 = vmatpush1.msra.mxu0 0.0
        %1568 = vmatprep.subr.mxu0 0.0
        %1569 = vmatpush1.msra.mxu0 0.0
        %1570 = vmatprep.subr.mxu0 0.0
        %1571 = vmatpush1.msra.mxu0 0.0
        %1572 = vmatprep.subr.mxu0 0.0
        %1573 = vmatpush1.msra.mxu0 0.0
        %1574 = vmatprep.subr.mxu0 0.0
        %1575 = vmatpush1.msra.mxu0 0.0
        %1576 = vmatprep.subr.mxu0 0.0
        %1577 = vmatpush1.msra.mxu0 0.0
        %1578 = vmatprep.subr.mxu0 0.0
        %1579 = vmatpush1.msra.mxu0 0.0
        %1580 = vmatprep.subr.mxu0 0.0
        %1581 = vmatpush1.msra.mxu0 %v396
        %1582 = vmatprep.subr.mxu0 0.0
        %1583 = vmatpush1.msra.mxu0 %v395
        %1584 = vmatprep.subr.mxu0 0.0
        %1585 = vmatpush2.msra.mxu0 0.0
        %1586 = vmatprep.subr.mxu0 0.0
        %1587 = vmatpush2.msra.mxu0 0.0
        %1588 = vmatprep.subr.mxu0 0.0
        %1589 = vmatpush2.msra.mxu0 0.0
        %1590 = vmatprep.subr.mxu0 0.0
        %1591 = vmatpush2.msra.mxu0 0.0
        %1592 = vmatprep.subr.mxu0 0.0
        %1593 = vmatpush2.msra.mxu0 0.0
        %1594 = vmatprep.subr.mxu0 0.0
        %1595 = vmatpush2.msra.mxu0 0.0
        %1596 = vmatprep.subr.mxu0 0.0
        %1597 = vmatpush2.msra.mxu0 0.0
        %1598 = vmatprep.subr.mxu0 0.0
        %1599 = vmatpush2.msra.mxu0 0.0
        %1600 = vmatprep.subr.mxu0 0.0
        %1601 = vmatpush2.msra.mxu0 0.0
        %1602 = vmatprep.subr.mxu0 0.0
        %1603 = vmatpush2.msra.mxu0 0.0
        %1604 = vmatprep.subr.mxu0 0.0
        %1605 = vmatpush2.msra.mxu0 0.0
        %1606 = vmatprep.subr.mxu0 0.0
        %1607 = vmatpush2.msra.mxu0 0.0
        %1608 = vmatprep.subr.mxu0 0.0
        %1609 = vmatpush2.msra.mxu0 0.0
        %1610 = vmatprep.subr.mxu0 0.0
        %1611 = vmatpush2.msra.mxu0 0.0
        %1612 = vmatprep.subr.mxu0 0.0
        %1613 = vmatpush2.msra.mxu0 0.0
        %1614 = vmatprep.subr.mxu0 0.0
        %1615 = vmatpush2.msra.mxu0 0.0
        %1616 = vmatprep.mubr.f32.mxu0 0.0
        %1617 = vmatmul.mubr.f32.gmra.mxu0 %v1550
        %v1618 = vpop.f32.mrf.mxu0
        %v1619 = vadd.f32 0.0, %v1618
        %v1620 = vpop.f32.mrf.mxu0
        %1621 = vdwg.mxu0
        %v1622 = vsel %vm1108, %v1156, 0
        %1624 = vmatprep.subr.mxu0 0.0
        %1625 = vmatpush1.msra.mxu0 0.0
        %1626 = vmatprep.subr.mxu0 0.0
        %1627 = vmatpush1.msra.mxu0 0.0
        %1628 = vmatprep.subr.mxu0 0.0
        %1629 = vmatpush1.msra.mxu0 0.0
        %1630 = vmatprep.subr.mxu0 0.0
        %1631 = vmatpush1.msra.mxu0 0.0
        %1632 = vmatprep.subr.mxu0 0.0
        %1633 = vmatpush1.msra.mxu0 0.0
        %1634 = vmatprep.subr.mxu0 0.0
        %1635 = vmatpush1.msra.mxu0 0.0
        %1636 = vmatprep.subr.mxu0 0.0
        %1637 = vmatpush1.msra.mxu0 0.0
        %1638 = vmatprep.subr.mxu0 0.0
        %1639 = vmatpush1.msra.mxu0 0.0
        %1640 = vmatprep.subr.mxu0 0.0
        %1641 = vmatpush1.msra.mxu0 0.0
        %1642 = vmatprep.subr.mxu0 0.0
        %1643 = vmatpush1.msra.mxu0 0.0
        %1644 = vmatprep.subr.mxu0 0.0
        %1645 = vmatpush1.msra.mxu0 0.0
        %1646 = vmatprep.subr.mxu0 0.0
        %1647 = vmatpush1.msra.mxu0 0.0
        %1648 = vmatprep.subr.mxu0 0.0
        %1649 = vmatpush1.msra.mxu0 0.0
        %1650 = vmatprep.subr.mxu0 0.0
        %1651 = vmatpush1.msra.mxu0 0.0
        %1652 = vmatprep.subr.mxu0 0.0
        %1653 = vmatpush1.msra.mxu0 %v398
        %1654 = vmatprep.subr.mxu0 0.0
        %1655 = vmatpush1.msra.mxu0 %v397
        %1656 = vmatprep.subr.mxu0 0.0
        %1657 = vmatpush2.msra.mxu0 0.0
        %1658 = vmatprep.subr.mxu0 0.0
        %1659 = vmatpush2.msra.mxu0 0.0
        %1660 = vmatprep.subr.mxu0 0.0
        %1661 = vmatpush2.msra.mxu0 0.0
        %1662 = vmatprep.subr.mxu0 0.0
        %1663 = vmatpush2.msra.mxu0 0.0
        %1664 = vmatprep.subr.mxu0 0.0
        %1665 = vmatpush2.msra.mxu0 0.0
        %1666 = vmatprep.subr.mxu0 0.0
        %1667 = vmatpush2.msra.mxu0 0.0
        %1668 = vmatprep.subr.mxu0 0.0
        %1669 = vmatpush2.msra.mxu0 0.0
        %1670 = vmatprep.subr.mxu0 0.0
        %1671 = vmatpush2.msra.mxu0 0.0
        %1672 = vmatprep.subr.mxu0 0.0
        %1673 = vmatpush2.msra.mxu0 0.0
        %1674 = vmatprep.subr.mxu0 0.0
        %1675 = vmatpush2.msra.mxu0 0.0
        %1676 = vmatprep.subr.mxu0 0.0
        %1677 = vmatpush2.msra.mxu0 0.0
        %1678 = vmatprep.subr.mxu0 0.0
        %1679 = vmatpush2.msra.mxu0 0.0
        %1680 = vmatprep.subr.mxu0 0.0
        %1681 = vmatpush2.msra.mxu0 0.0
        %1682 = vmatprep.subr.mxu0 0.0
        %1683 = vmatpush2.msra.mxu0 0.0
        %1684 = vmatprep.subr.mxu0 0.0
        %1685 = vmatpush2.msra.mxu0 0.0
        %1686 = vmatprep.subr.mxu0 0.0
        %1687 = vmatpush2.msra.mxu0 0.0
        %1688 = vmatprep.mubr.f32.mxu0 0.0
        %1689 = vmatmul.mubr.f32.gmra.mxu0 %v1622
        %v1690 = vpop.f32.mrf.mxu0
        %v1691 = vadd.f32 0.0, %v1690
        %v1692 = vpop.f32.mrf.mxu0
        %1693 = vdwg.mxu0
        %v1694 = vsel %vm1108, %v1158, 0
        %1696 = vmatprep.subr.mxu0 0.0
        %1697 = vmatpush1.msra.mxu0 0.0
        %1698 = vmatprep.subr.mxu0 0.0
        %1699 = vmatpush1.msra.mxu0 0.0
        %1700 = vmatprep.subr.mxu0 0.0
        %1701 = vmatpush1.msra.mxu0 0.0
        %1702 = vmatprep.subr.mxu0 0.0
        %1703 = vmatpush1.msra.mxu0 0.0
        %1704 = vmatprep.subr.mxu0 0.0
        %1705 = vmatpush1.msra.mxu0 0.0
        %1706 = vmatprep.subr.mxu0 0.0
        %1707 = vmatpush1.msra.mxu0 0.0
        %1708 = vmatprep.subr.mxu0 0.0
        %1709 = vmatpush1.msra.mxu0 0.0
        %1710 = vmatprep.subr.mxu0 0.0
        %1711 = vmatpush1.msra.mxu0 0.0
        %1712 = vmatprep.subr.mxu0 0.0
        %1713 = vmatpush1.msra.mxu0 0.0
        %1714 = vmatprep.subr.mxu0 0.0
        %1715 = vmatpush1.msra.mxu0 0.0
        %1716 = vmatprep.subr.mxu0 0.0
        %1717 = vmatpush1.msra.mxu0 0.0
        %1718 = vmatprep.subr.mxu0 0.0
        %1719 = vmatpush1.msra.mxu0 0.0
        %1720 = vmatprep.subr.mxu0 0.0
        %1721 = vmatpush1.msra.mxu0 0.0
        %1722 = vmatprep.subr.mxu0 0.0
        %1723 = vmatpush1.msra.mxu0 0.0
        %1724 = vmatprep.subr.mxu0 0.0
        %1725 = vmatpush1.msra.mxu0 %v400
        %1726 = vmatprep.subr.mxu0 0.0
        %1727 = vmatpush1.msra.mxu0 %v399
        %1728 = vmatprep.subr.mxu0 0.0
        %1729 = vmatpush2.msra.mxu0 0.0
        %1730 = vmatprep.subr.mxu0 0.0
        %1731 = vmatpush2.msra.mxu0 0.0
        %1732 = vmatprep.subr.mxu0 0.0
        %1733 = vmatpush2.msra.mxu0 0.0
        %1734 = vmatprep.subr.mxu0 0.0
        %1735 = vmatpush2.msra.mxu0 0.0
        %1736 = vmatprep.subr.mxu0 0.0
        %1737 = vmatpush2.msra.mxu0 0.0
        %1738 = vmatprep.subr.mxu0 0.0
        %1739 = vmatpush2.msra.mxu0 0.0
        %1740 = vmatprep.subr.mxu0 0.0
        %1741 = vmatpush2.msra.mxu0 0.0
        %1742 = vmatprep.subr.mxu0 0.0
        %1743 = vmatpush2.msra.mxu0 0.0
        %1744 = vmatprep.subr.mxu0 0.0
        %1745 = vmatpush2.msra.mxu0 0.0
        %1746 = vmatprep.subr.mxu0 0.0
        %1747 = vmatpush2.msra.mxu0 0.0
        %1748 = vmatprep.subr.mxu0 0.0
        %1749 = vmatpush2.msra.mxu0 0.0
        %1750 = vmatprep.subr.mxu0 0.0
        %1751 = vmatpush2.msra.mxu0 0.0
        %1752 = vmatprep.subr.mxu0 0.0
        %1753 = vmatpush2.msra.mxu0 0.0
        %1754 = vmatprep.subr.mxu0 0.0
        %1755 = vmatpush2.msra.mxu0 0.0
        %1756 = vmatprep.subr.mxu0 0.0
        %1757 = vmatpush2.msra.mxu0 0.0
        %1758 = vmatprep.subr.mxu0 0.0
        %1759 = vmatpush2.msra.mxu0 0.0
        %1760 = vmatprep.mubr.f32.mxu0 0.0
        %1761 = vmatmul.mubr.f32.gmra.mxu0 %v1694
        %v1762 = vpop.f32.mrf.mxu0
        %v1763 = vadd.f32 0.0, %v1762
        %v1764 = vpop.f32.mrf.mxu0
        %1765 = vdwg.mxu0
        %v1766 = vld [vmem:[#allocation5] sm:$0xff]
        %1768 = vset.pattern.permute.xlu0 0
        %1769 = vperm.xlu0 %1768, %v1115
        %v1770 = vpop.permute.xlu0 %1769
        %v1772 = vmul.f32 %v1770, %v1766
        %v1781 = vrot.slane %v1331, 7
        %v1782 = vsel %vm1087, %v1781, %v1259
        %v1783 = vrot.slane %v1403, 6
        %v1784 = vsel %vm1090, %v1783, %v1782
        %v1785 = vrot.slane %v1475, 5
        %v1786 = vsel %vm1093, %v1785, %v1784
        %v1787 = vrot.slane %v1547, 4
        %v1788 = vsel %vm1096, %v1787, %v1786
        %v1789 = vrot.slane %v1619, 3
        %v1790 = vsel %vm1099, %v1789, %v1788
        %v1791 = vrot.slane %v1691, 2
        %v1792 = vsel %vm1102, %v1791, %v1790
        %v1793 = vrot.slane %v1763, 1
        %v1794 = vsel %vm1105, %v1793, %v1792
        %v1796 = vadd.f32 %v1772, %v1794
        %1797 = vst.msk [vmem:[#allocation5] sm:$0xff] %vm452, %v1796
        %1798 = vst.msk [vmem:[#allocation3] sm:$0xff] %vm1188, %v1112
        // Predicated region
        $region49: #{tpu_custom_call.1} parent=31 // pred_check
          %p1799 = pneg %p297
        $region50: #{tpu_custom_call.1} parent=31 // pred_check_branch
          %1801 = sbr.rel (%p1799) target = $region52
        $region51: #{tpu_custom_call.1} parent=31 // pred_region
          %v1802 = vld [vmem:[#allocation4] sm:$0xff]
          %v1803 = vrcp.pop %v1802
          %v1804 = vmul.f32 %v1802, %v1803
          %v1805 = vsub.f32 2.0, %v1804
          %v1806 = vmul.f32 %v1803, %v1805
          %v1807 = vld [vmem:[#allocation5] sm:$0xff]
          %1809 = vset.pattern.permute.xlu0 0
          %1810 = vperm.xlu0 %1809, %v1806
          %v1811 = vpop.permute.xlu0 %1810
          %v1813 = vmul.f32 %v1807, %v1811
          %1814 = vst.msk [vmem:[%s287] sm:$0xff] %vm452, %v1813
          %v1815 = vrot.slane %v1811, 1
          %v1816 = vrot.slane %v1811, 2
          %v1817 = vrot.slane %v1811, 3
          %v1818 = vrot.slane %v1811, 4
          %v1819 = vrot.slane %v1811, 5
          %v1820 = vrot.slane %v1811, 6
          %v1821 = vrot.slane %v1811, 7
          %v1829 = vmul.f32 %v1144, %v1811
          %v1830 = vmul.f32 %v1146, %v1815
          %v1831 = vmul.f32 %v1148, %v1816
          %v1832 = vmul.f32 %v1150, %v1817
          %v1833 = vmul.f32 %v1152, %v1818
          %v1834 = vmul.f32 %v1154, %v1819
          %v1835 = vmul.f32 %v1156, %v1820
          %v1836 = vmul.f32 %v1158, %v1821
          %v1845 = vrot.slane %v1830, 7
          %v1846 = vsel %vm1087, %v1845, %v1829
          %v1847 = vrot.slane %v1831, 6
          %v1848 = vsel %vm1090, %v1847, %v1846
          %v1849 = vrot.slane %v1832, 5
          %v1850 = vsel %vm1093, %v1849, %v1848
          %v1851 = vrot.slane %v1833, 4
          %v1852 = vsel %vm1096, %v1851, %v1850
          %v1853 = vrot.slane %v1834, 3
          %v1854 = vsel %vm1099, %v1853, %v1852
          %v1855 = vrot.slane %v1835, 2
          %v1856 = vsel %vm1102, %v1855, %v1854
          %v1857 = vrot.slane %v1836, 1
          %v1858 = vsel %vm1105, %v1857, %v1856
          %1860 = vst.msk [vmem:[%s294] sm:$0xff] %vm1108, %v1858
        $region52: #{tpu_custom_call.1} parent=31 // pred_fallthru
          _
        %s1861 = sand.u32 %s123, 1
        %s1862 = scalar_lea.sflag [#allocation9], %s1861
        %s1863 = sand.u32 %s123, 1
        %s1864 = smul.addr %s1863, 8
        %s1865 = scalar_lea.vmem [#allocation13], %s1864
        %s1866 = sand.u32 %s149, 1
        %s1867 = scalar_lea.sflag [#allocation15], %s1866
        %s1868 = sand.u32 %s149, 1
        %s1869 = smul.addr %s1868, 8
        %s1870 = scalar_lea.vmem [#allocation14], %s1869
        // Predicated region
        $region53: #{tpu_custom_call.1} parent=31 // pred_check
          %p1871 = pneg %p133
        $region54: #{tpu_custom_call.1} parent=31 // pred_check_branch
          %1873 = sbr.rel (%p1871) target = $region56
        $region55: #{tpu_custom_call.1} parent=31 // pred_region
          %s1875 = ssub.s32 128, 128
          %1876 = vsyncadd %s1862, %s1875
          %s1877 = smul.addr %s32, 128
          %s1878 = scalar_lea.hbm %s3, %s1877
          %s1880 = sshll.u32 %s1865, 4
          %s1881 = int_to_ptr.vmem [resolvable:$true] %s1880
          %1883 = dma.vmem_to_hbm [thread:$0]  %s1881, 128, %s1878, %s1862
        $region56: #{tpu_custom_call.1} parent=31 // pred_fallthru
          _
        // Predicated region
        $region57: #{tpu_custom_call.1} parent=31 // pred_check
          %p1884 = pneg %p159
        $region58: #{tpu_custom_call.1} parent=31 // pred_check_branch
          %1886 = sbr.rel (%p1884) target = $region60
        $region59: #{tpu_custom_call.1} parent=31 // pred_region
          %s1888 = ssub.s32 128, 128
          %1889 = vsyncadd %s1867, %s1888
          %s1890 = smul.addr %s32, 128
          %s1891 = scalar_lea.hbm %s4, %s1890
          %s1893 = sshll.u32 %s1870, 4
          %s1894 = int_to_ptr.vmem [resolvable:$true] %s1893
          %1896 = dma.vmem_to_hbm [thread:$0]  %s1894, 128, %s1891, %s1867
        $region60: #{tpu_custom_call.1} parent=31 // pred_fallthru
          _
      $region32: #{tpu_custom_call.1} parent=5 // pred_fallthru
        _
      %p1897 = scmp.le.s32.totalorder 2, %s23
      // Predicated region
      $region61: #{tpu_custom_call.1} parent=5 // pred_check
        %p1898 = pneg %p1897
      $region62: #{tpu_custom_call.1} parent=5 // pred_check_branch
        %1900 = sbr.rel (%p1898) target = $region64
      $region63: #{tpu_custom_call.1} parent=5 // pred_region
        %s1901 = ssub.s32 %s23, 2
        // Predicated region
        $region65: #{tpu_custom_call.1} parent=63 // pred_check
          %p1902 = pneg %p139
        $region66: #{tpu_custom_call.1} parent=63 // pred_check_branch
          %1904 = sbr.rel (%p1902) target = $region68
        $region67: #{tpu_custom_call.1} parent=63 // pred_region
          %s1905 = sand.u32 %s124, 1
          %s1906 = scalar_lea.sflag [#allocation9], %s1905
          %s1907 = sand.u32 %s124, 1
          %s1908 = smul.addr %s1907, 8
          %s1909 = scalar_lea.vmem [#allocation13], %s1908
          %1910 = dma.done %s1906, 128
        $region68: #{tpu_custom_call.1} parent=63 // pred_fallthru
          _
        // Predicated region
        $region69: #{tpu_custom_call.1} parent=63 // pred_check
          %p1911 = pneg %p165
        $region70: #{tpu_custom_call.1} parent=63 // pred_check_branch
          %1913 = sbr.rel (%p1911) target = $region72
        $region71: #{tpu_custom_call.1} parent=63 // pred_region
          %s1914 = sand.u32 %s150, 1
          %s1915 = scalar_lea.sflag [#allocation15], %s1914
          %s1916 = sand.u32 %s150, 1
          %s1917 = smul.addr %s1916, 8
          %s1918 = scalar_lea.vmem [#allocation14], %s1917
          %1919 = dma.done %s1915, 128
        $region72: #{tpu_custom_call.1} parent=63 // pred_fallthru
          _
      $region64: #{tpu_custom_call.1} parent=5 // pred_fallthru
        _
    $region6: #{tpu_custom_call.1} parent=1 // loop_footer
      %s27 = sadd.s32 1, %s23
    $region7: #{tpu_custom_call.1} parent=1 // loop_footer_branch
      %22 = sbr.rel target = $region3
    $region8: #{tpu_custom_call.1} parent=1 // loop_exit
      _
    %1920 = vsyncpa [#allocation8], 1
    %s1921 = scalar_lea.sflag [#allocation8], 1
    %1922 = vsyncpa %s1921, 1
    %1923 = vsyncpa [#allocation11], 1
    %s1924 = scalar_lea.sflag [#allocation11], 1
    %1925 = vsyncpa %s1924, 1
    %1926 = vsyncpa [#allocation9], 1
    %s1927 = scalar_lea.sflag [#allocation9], 1
    %1928 = vsyncpa %s1927, 1
    %1929 = vsyncpa [#allocation15], 1
    %s1930 = scalar_lea.sflag [#allocation15], 1
    %1931 = vsyncpa %s1930, 1

</llo_original>
